<compile_context>
chip_gen: v7x
topology: tpu7x:2x2x1
jax: 0.10.0
libtpu: 0.0.40
codegen_flags: <defaults>
</compile_context>

<pallas_src>
import jax
import jax.numpy as jnp
from jax import lax
from jax.experimental import pallas as pl
from jax.experimental.pallas import tpu as pltpu

BN_EPS = 1e-5


def _sigmoid(x):
    return 1.0 / (1.0 + jnp.exp(-x))


def _make_gru_stack_kernel(num_layers, rnn_size):
    r = rnn_size

    def kernel(*refs):
        # refs = (x, prev_hs, [wi, bi, wh, bh, gamma, beta] * num_layers, out)
        x_ref, prev_ref = refs[0], refs[1]
        out_ref = refs[-1]
        p = refs[2:-1]

        x_in = x_ref[...].astype(jnp.float32)            # (B, in_dim)
        batch = x_in.shape[0]
        inv_b = jnp.float32(1.0 / batch)

        def batchnorm(y, gamma, beta):
            # Training-mode BatchNorm1d: per-feature batch mean / biased var.
            # gamma is folded into the rsqrt scale -> one FMA per element.
            mean = jnp.sum(y, axis=0, keepdims=True) * inv_b
            yc = y - mean
            var = jnp.sum(yc * yc, axis=0, keepdims=True) * inv_b
            scale = gamma * lax.rsqrt(var + BN_EPS)
            return yc * scale + beta

        for L in range(num_layers):                       # static unroll (L=2)
            wi, bi, wh, bh, gamma, beta = p[6 * L:6 * (L + 1)]
            prev_h = prev_ref[L].astype(jnp.float32)      # (B, R)

            # Linear layers on the MXU, f32 accumulation.  (The Linear biases
            # are mathematically cancelled by the training-mode BN mean
            # subtraction, but are kept for exact fidelity with the module.)
            i2h = jnp.dot(x_in, wi[...],
                          preferred_element_type=jnp.float32) + bi[...]
            h2h = jnp.dot(prev_h, wh[...],
                          preferred_element_type=jnp.float32) + bh[...]

            # Shared BatchNorm1d(3R) applied to each pre-activation (each call
            # uses its own batch statistics, as in PyTorch training mode).
            g, b = gamma[...], beta[...]
            i2h = batchnorm(i2h, g, b)
            h2h = batchnorm(h2h, g, b)
            # TODO(synk): nn.Dropout(0.25) is stochastic; forward is
            # implemented in eval mode (identity) so the kernel is
            # deterministic.

            wx1, wx2, wx3 = i2h[:, 0:r], i2h[:, r:2 * r], i2h[:, 2 * r:3 * r]
            uh1, uh2, uh3 = h2h[:, 0:r], h2h[:, r:2 * r], h2h[:, 2 * r:3 * r]

            zt = _sigmoid(wx1 + uh1)
            rt = _sigmoid(wx2 + uh2)
            h_cand = jnp.tanh(wx3 + rt * uh3)
            ht = (1.0 - zt) * prev_h + zt * h_cand        # (B, R)

            out_ref[L] = ht.astype(out_ref.dtype)
            x_in = ht                                     # feeds next layer

    return kernel


def build_gru_stack(x, prev_hs, params):
    """x: (B, input_size); prev_hs: (num_layers, B, rnn_size).
    params[L]: dict with 'wi' (in_dim, 3R), 'bi' (3R,), 'wh' (R, 3R),
    'bh' (3R,), 'gamma' (3R,), 'beta' (3R,).  Returns (num_layers, B, R)."""
    num_layers, batch, rnn_size = prev_hs.shape
    flat = [x.astype(jnp.float32), prev_hs.astype(jnp.float32)]
    for p in params:
        flat += [
            p["wi"].astype(jnp.float32),
            p["bi"].reshape(1, -1).astype(jnp.float32),
            p["wh"].astype(jnp.float32),
            p["bh"].reshape(1, -1).astype(jnp.float32),
            p["gamma"].reshape(1, -1).astype(jnp.float32),
            p["beta"].reshape(1, -1).astype(jnp.float32),
        ]
    vmem = pl.BlockSpec(memory_space=pltpu.MemorySpace.VMEM)
    kernel = _make_gru_stack_kernel(num_layers, rnn_size)
    return pl.pallas_call(
        kernel,
        out_shape=jax.ShapeDtypeStruct((num_layers, batch, rnn_size),
                                       jnp.float32),
        in_specs=[vmem] * len(flat),
        out_specs=vmem,
        compiler_params=pltpu.CompilerParams(vmem_limit_bytes=32 << 20),
    )(*flat)


def _init_params(key, input_size, rnn_size, num_layers):
    params = []
    in_dim = input_size
    for _ in range(num_layers):
        key, *ks = jax.random.split(key, 7)
        params.append(dict(
            wi=jax.random.normal(ks[0], (in_dim, 3 * rnn_size), jnp.float32) * 0.1,
            bi=jax.random.normal(ks[1], (3 * rnn_size,), jnp.float32) * 0.1,
            wh=jax.random.normal(ks[2], (rnn_size, 3 * rnn_size), jnp.float32) * 0.1,
            bh=jax.random.normal(ks[3], (3 * rnn_size,), jnp.float32) * 0.1,
            gamma=1.0 + jax.random.normal(ks[4], (3 * rnn_size,), jnp.float32) * 0.1,
            beta=jax.random.normal(ks[5], (3 * rnn_size,), jnp.float32) * 0.1,
        ))
        in_dim = rnn_size
    return params


def _reference_forward(x, prev_hs, params):
    # Pure-JAX reference of BuildGRUStack.forward (BN in training mode,
    # dropout = identity), high-precision matmuls.
    next_hs = []
    x_in = x
    for L, p in enumerate(params):
        prev_h = prev_hs[L]

        def bn(y):
            m = jnp.mean(y, axis=0, keepdims=True)
            v = jnp.mean((y - m) ** 2, axis=0, keepdims=True)
            return (y - m) / jnp.sqrt(v + BN_EPS) * p["gamma"] + p["beta"]

        i2h = bn(jnp.dot(x_in, p["wi"], precision=lax.Precision.HIGHEST) + p["bi"])
        h2h = bn(jnp.dot(prev_h, p["wh"], precision=lax.Precision.HIGHEST) + p["bh"])
        wx1, wx2, wx3 = jnp.split(i2h, 3, axis=1)
        uh1, uh2, uh3 = jnp.split(h2h, 3, axis=1)
        zt = jax.nn.sigmoid(wx1 + uh1)
        rt = jax.nn.sigmoid(wx2 + uh2)
        h_cand = jnp.tanh(wx3 + rt * uh3)
        ht = (1.0 - zt) * prev_h + zt * h_cand
        next_hs.append(ht)
        x_in = ht
    return jnp.stack(next_hs)


if __name__ == "__main__":
    input_size, rnn_size, num_layers, batch = 20, 200, 2, 3

    key = jax.random.PRNGKey(0)
    k_x, k_h, k_p = jax.random.split(key, 3)
    x = jax.random.normal(k_x, (batch, input_size), jnp.float32)
    prev_hs = jax.random.normal(k_h, (num_layers, batch, rnn_size), jnp.float32)
    params = _init_params(k_p, input_size, rnn_size, num_layers)

    out = build_gru_stack(x, prev_hs, params)
    jax.block_until_ready(out)

    ref = _reference_forward(x, prev_hs, params)
    assert out.shape == (num_layers, batch, rnn_size), out.shape
    assert jnp.allclose(out, ref, rtol=2e-3, atol=2e-3), (
        "max abs err", float(jnp.max(jnp.abs(out - ref))))

    print("KERNEL_OK")
</pallas_src>

<mosaic_0001>
module attributes {stable_mosaic.version = 11 : i64} {
  func.func @kernel(%arg0: memref<3x20xf32, #tpu.memory_space<vmem>>, %arg1: memref<2x3x200xf32, #tpu.memory_space<vmem>>, %arg2: memref<20x600xf32, #tpu.memory_space<vmem>>, %arg3: memref<1x600xf32, #tpu.memory_space<vmem>>, %arg4: memref<200x600xf32, #tpu.memory_space<vmem>>, %arg5: memref<1x600xf32, #tpu.memory_space<vmem>>, %arg6: memref<1x600xf32, #tpu.memory_space<vmem>>, %arg7: memref<1x600xf32, #tpu.memory_space<vmem>>, %arg8: memref<200x600xf32, #tpu.memory_space<vmem>>, %arg9: memref<1x600xf32, #tpu.memory_space<vmem>>, %arg10: memref<200x600xf32, #tpu.memory_space<vmem>>, %arg11: memref<1x600xf32, #tpu.memory_space<vmem>>, %arg12: memref<1x600xf32, #tpu.memory_space<vmem>>, %arg13: memref<1x600xf32, #tpu.memory_space<vmem>>, %arg14: memref<2x3x200xf32, #tpu.memory_space<vmem>>) attributes {dimension_semantics = [], scalar_prefetch = 0 : i64, scratch_operands = 0 : i64, tpu.core_type = #tpu.core_type<tc>} {
    %c0 = arith.constant 0 : index
    %c0_0 = arith.constant 0 : index
    %0 = vector.load %arg0[%c0, %c0_0] : memref<3x20xf32, #tpu.memory_space<vmem>>, vector<3x20xf32>
    %c0_1 = arith.constant 0 : index
    %c0_2 = arith.constant 0 : index
    %c0_3 = arith.constant 0 : index
    %1 = vector.load %arg1[%c0_1, %c0_2, %c0_3] : memref<2x3x200xf32, #tpu.memory_space<vmem>>, vector<1x3x200xf32>
    %2 = vector.shape_cast %1 : vector<1x3x200xf32> to vector<3x200xf32>
    %c0_4 = arith.constant 0 : index
    %c0_5 = arith.constant 0 : index
    %3 = vector.load %arg2[%c0_4, %c0_5] : memref<20x600xf32, #tpu.memory_space<vmem>>, vector<20x600xf32>
    %cst = arith.constant dense<0.000000e+00> : vector<3x600xf32>
    %4 = tpu.matmul %0, %3, %cst {dimension_numbers = #tpu.dot_dimension_numbers<[1], [0], [0], [1], [0, 0, 1, 1], [], []>} : vector<3x20xf32>, vector<20x600xf32>, vector<3x600xf32> -> vector<3x600xf32>
    %c0_6 = arith.constant 0 : index
    %c0_7 = arith.constant 0 : index
    %5 = vector.load %arg3[%c0_6, %c0_7] : memref<1x600xf32, #tpu.memory_space<vmem>>, vector<1x600xf32>
    %6 = vector.broadcast %5 : vector<1x600xf32> to vector<3x600xf32>
    %7 = arith.addf %4, %6 : vector<3x600xf32>
    %c0_8 = arith.constant 0 : index
    %c0_9 = arith.constant 0 : index
    %8 = vector.load %arg4[%c0_8, %c0_9] : memref<200x600xf32, #tpu.memory_space<vmem>>, vector<200x600xf32>
    %cst_10 = arith.constant dense<0.000000e+00> : vector<3x600xf32>
    %9 = tpu.matmul %2, %8, %cst_10 {dimension_numbers = #tpu.dot_dimension_numbers<[1], [0], [0], [1], [0, 0, 1, 1], [], []>} : vector<3x200xf32>, vector<200x600xf32>, vector<3x600xf32> -> vector<3x600xf32>
    %c0_11 = arith.constant 0 : index
    %c0_12 = arith.constant 0 : index
    %10 = vector.load %arg5[%c0_11, %c0_12] : memref<1x600xf32, #tpu.memory_space<vmem>>, vector<1x600xf32>
    %11 = vector.broadcast %10 : vector<1x600xf32> to vector<3x600xf32>
    %12 = arith.addf %9, %11 : vector<3x600xf32>
    %c0_13 = arith.constant 0 : index
    %c0_14 = arith.constant 0 : index
    %13 = vector.load %arg6[%c0_13, %c0_14] : memref<1x600xf32, #tpu.memory_space<vmem>>, vector<1x600xf32>
    %c0_15 = arith.constant 0 : index
    %c0_16 = arith.constant 0 : index
    %14 = vector.load %arg7[%c0_15, %c0_16] : memref<1x600xf32, #tpu.memory_space<vmem>>, vector<1x600xf32>
    %cst_17 = arith.constant dense<0.000000e+00> : vector<600xf32>
    %15 = vector.multi_reduction <add>, %7, %cst_17 [0] : vector<3x600xf32> to vector<600xf32>
    %16 = vector.shape_cast %15 : vector<600xf32> to vector<1x600xf32>
    %cst_18 = arith.constant 0.333333343 : f32
    %17 = vector.broadcast %cst_18 : f32 to vector<1x600xf32>
    %18 = arith.mulf %16, %17 : vector<1x600xf32>
    %19 = vector.broadcast %18 : vector<1x600xf32> to vector<3x600xf32>
    %20 = arith.subf %7, %19 : vector<3x600xf32>
    %21 = arith.mulf %20, %20 : vector<3x600xf32>
    %cst_19 = arith.constant dense<0.000000e+00> : vector<600xf32>
    %22 = vector.multi_reduction <add>, %21, %cst_19 [0] : vector<3x600xf32> to vector<600xf32>
    %23 = vector.shape_cast %22 : vector<600xf32> to vector<1x600xf32>
    %cst_20 = arith.constant 0.333333343 : f32
    %24 = vector.broadcast %cst_20 : f32 to vector<1x600xf32>
    %25 = arith.mulf %23, %24 : vector<1x600xf32>
    %cst_21 = arith.constant 9.99999974E-6 : f32
    %26 = vector.broadcast %cst_21 : f32 to vector<1x600xf32>
    %27 = arith.addf %25, %26 : vector<1x600xf32>
    %28 = math.rsqrt %27 : vector<1x600xf32>
    %29 = arith.mulf %13, %28 : vector<1x600xf32>
    %30 = vector.broadcast %29 : vector<1x600xf32> to vector<3x600xf32>
    %31 = arith.mulf %20, %30 : vector<3x600xf32>
    %32 = vector.broadcast %14 : vector<1x600xf32> to vector<3x600xf32>
    %33 = arith.addf %31, %32 : vector<3x600xf32>
    %cst_22 = arith.constant dense<0.000000e+00> : vector<600xf32>
    %34 = vector.multi_reduction <add>, %12, %cst_22 [0] : vector<3x600xf32> to vector<600xf32>
    %35 = vector.shape_cast %34 : vector<600xf32> to vector<1x600xf32>
    %cst_23 = arith.constant 0.333333343 : f32
    %36 = vector.broadcast %cst_23 : f32 to vector<1x600xf32>
    %37 = arith.mulf %35, %36 : vector<1x600xf32>
    %38 = vector.broadcast %37 : vector<1x600xf32> to vector<3x600xf32>
    %39 = arith.subf %12, %38 : vector<3x600xf32>
    %40 = arith.mulf %39, %39 : vector<3x600xf32>
    %cst_24 = arith.constant dense<0.000000e+00> : vector<600xf32>
    %41 = vector.multi_reduction <add>, %40, %cst_24 [0] : vector<3x600xf32> to vector<600xf32>
    %42 = vector.shape_cast %41 : vector<600xf32> to vector<1x600xf32>
    %cst_25 = arith.constant 0.333333343 : f32
    %43 = vector.broadcast %cst_25 : f32 to vector<1x600xf32>
    %44 = arith.mulf %42, %43 : vector<1x600xf32>
    %cst_26 = arith.constant 9.99999974E-6 : f32
    %45 = vector.broadcast %cst_26 : f32 to vector<1x600xf32>
    %46 = arith.addf %44, %45 : vector<1x600xf32>
    %47 = math.rsqrt %46 : vector<1x600xf32>
    %48 = arith.mulf %13, %47 : vector<1x600xf32>
    %49 = vector.broadcast %48 : vector<1x600xf32> to vector<3x600xf32>
    %50 = arith.mulf %39, %49 : vector<3x600xf32>
    %51 = vector.broadcast %14 : vector<1x600xf32> to vector<3x600xf32>
    %52 = arith.addf %50, %51 : vector<3x600xf32>
    %53 = vector.extract_strided_slice %33 {offsets = [0, 0], sizes = [3, 200], strides = [1, 1]} : vector<3x600xf32> to vector<3x200xf32>
    %54 = vector.extract_strided_slice %33 {offsets = [0, 200], sizes = [3, 200], strides = [1, 1]} : vector<3x600xf32> to vector<3x200xf32>
    %55 = vector.extract_strided_slice %33 {offsets = [0, 400], sizes = [3, 200], strides = [1, 1]} : vector<3x600xf32> to vector<3x200xf32>
    %56 = vector.extract_strided_slice %52 {offsets = [0, 0], sizes = [3, 200], strides = [1, 1]} : vector<3x600xf32> to vector<3x200xf32>
    %57 = vector.extract_strided_slice %52 {offsets = [0, 200], sizes = [3, 200], strides = [1, 1]} : vector<3x600xf32> to vector<3x200xf32>
    %58 = vector.extract_strided_slice %52 {offsets = [0, 400], sizes = [3, 200], strides = [1, 1]} : vector<3x600xf32> to vector<3x200xf32>
    %59 = arith.addf %53, %56 : vector<3x200xf32>
    %cst_27 = arith.constant 0.000000e+00 : f32
    %60 = vector.broadcast %cst_27 : f32 to vector<3x200xf32>
    %61 = arith.subf %60, %59 : vector<3x200xf32>
    %62 = math.exp %61 : vector<3x200xf32>
    %cst_28 = arith.constant 1.000000e+00 : f32
    %63 = vector.broadcast %cst_28 : f32 to vector<3x200xf32>
    %64 = arith.addf %63, %62 : vector<3x200xf32>
    %cst_29 = arith.constant 1.000000e+00 : f32
    %65 = vector.broadcast %cst_29 : f32 to vector<3x200xf32>
    %66 = arith.divf %65, %64 : vector<3x200xf32>
    %67 = arith.addf %54, %57 : vector<3x200xf32>
    %cst_30 = arith.constant 0.000000e+00 : f32
    %68 = vector.broadcast %cst_30 : f32 to vector<3x200xf32>
    %69 = arith.subf %68, %67 : vector<3x200xf32>
    %70 = math.exp %69 : vector<3x200xf32>
    %cst_31 = arith.constant 1.000000e+00 : f32
    %71 = vector.broadcast %cst_31 : f32 to vector<3x200xf32>
    %72 = arith.addf %71, %70 : vector<3x200xf32>
    %cst_32 = arith.constant 1.000000e+00 : f32
    %73 = vector.broadcast %cst_32 : f32 to vector<3x200xf32>
    %74 = arith.divf %73, %72 : vector<3x200xf32>
    %75 = arith.mulf %74, %58 : vector<3x200xf32>
    %76 = arith.addf %55, %75 : vector<3x200xf32>
    %77 = math.tanh %76 : vector<3x200xf32>
    %cst_33 = arith.constant 1.000000e+00 : f32
    %78 = vector.broadcast %cst_33 : f32 to vector<3x200xf32>
    %79 = arith.subf %78, %66 : vector<3x200xf32>
    %80 = arith.mulf %79, %2 : vector<3x200xf32>
    %81 = arith.mulf %66, %77 : vector<3x200xf32>
    %82 = arith.addf %80, %81 : vector<3x200xf32>
    %c0_34 = arith.constant 0 : index
    %c0_35 = arith.constant 0 : index
    %c0_36 = arith.constant 0 : index
    %83 = vector.load %arg14[%c0_34, %c0_35, %c0_36] : memref<2x3x200xf32, #tpu.memory_space<vmem>>, vector<1x3x200xf32>
    %84 = vector.shape_cast %83 : vector<1x3x200xf32> to vector<3x200xf32>
    %85 = vector.shape_cast %82 : vector<3x200xf32> to vector<1x3x200xf32>
    tpu.vector_store %arg14[%c0_34, %c0_35, %c0_36], %85 {strides = array<i32>} : memref<2x3x200xf32, #tpu.memory_space<vmem>>, vector<1x3x200xf32>,
    %c1 = arith.constant 1 : index
    %c0_37 = arith.constant 0 : index
    %c0_38 = arith.constant 0 : index
    %86 = vector.load %arg1[%c1, %c0_37, %c0_38] : memref<2x3x200xf32, #tpu.memory_space<vmem>>, vector<1x3x200xf32>
    %87 = vector.shape_cast %86 : vector<1x3x200xf32> to vector<3x200xf32>
    %c0_39 = arith.constant 0 : index
    %c0_40 = arith.constant 0 : index
    %88 = vector.load %arg8[%c0_39, %c0_40] : memref<200x600xf32, #tpu.memory_space<vmem>>, vector<200x600xf32>
    %cst_41 = arith.constant dense<0.000000e+00> : vector<3x600xf32>
    %89 = tpu.matmul %82, %88, %cst_41 {dimension_numbers = #tpu.dot_dimension_numbers<[1], [0], [0], [1], [0, 0, 1, 1], [], []>} : vector<3x200xf32>, vector<200x600xf32>, vector<3x600xf32> -> vector<3x600xf32>
    %c0_42 = arith.constant 0 : index
    %c0_43 = arith.constant 0 : index
    %90 = vector.load %arg9[%c0_42, %c0_43] : memref<1x600xf32, #tpu.memory_space<vmem>>, vector<1x600xf32>
    %91 = vector.broadcast %90 : vector<1x600xf32> to vector<3x600xf32>
    %92 = arith.addf %89, %91 : vector<3x600xf32>
    %c0_44 = arith.constant 0 : index
    %c0_45 = arith.constant 0 : index
    %93 = vector.load %arg10[%c0_44, %c0_45] : memref<200x600xf32, #tpu.memory_space<vmem>>, vector<200x600xf32>
    %cst_46 = arith.constant dense<0.000000e+00> : vector<3x600xf32>
    %94 = tpu.matmul %87, %93, %cst_46 {dimension_numbers = #tpu.dot_dimension_numbers<[1], [0], [0], [1], [0, 0, 1, 1], [], []>} : vector<3x200xf32>, vector<200x600xf32>, vector<3x600xf32> -> vector<3x600xf32>
    %c0_47 = arith.constant 0 : index
    %c0_48 = arith.constant 0 : index
    %95 = vector.load %arg11[%c0_47, %c0_48] : memref<1x600xf32, #tpu.memory_space<vmem>>, vector<1x600xf32>
    %96 = vector.broadcast %95 : vector<1x600xf32> to vector<3x600xf32>
    %97 = arith.addf %94, %96 : vector<3x600xf32>
    %c0_49 = arith.constant 0 : index
    %c0_50 = arith.constant 0 : index
    %98 = vector.load %arg12[%c0_49, %c0_50] : memref<1x600xf32, #tpu.memory_space<vmem>>, vector<1x600xf32>
    %c0_51 = arith.constant 0 : index
    %c0_52 = arith.constant 0 : index
    %99 = vector.load %arg13[%c0_51, %c0_52] : memref<1x600xf32, #tpu.memory_space<vmem>>, vector<1x600xf32>
    %cst_53 = arith.constant dense<0.000000e+00> : vector<600xf32>
    %100 = vector.multi_reduction <add>, %92, %cst_53 [0] : vector<3x600xf32> to vector<600xf32>
    %101 = vector.shape_cast %100 : vector<600xf32> to vector<1x600xf32>
    %cst_54 = arith.constant 0.333333343 : f32
    %102 = vector.broadcast %cst_54 : f32 to vector<1x600xf32>
    %103 = arith.mulf %101, %102 : vector<1x600xf32>
    %104 = vector.broadcast %103 : vector<1x600xf32> to vector<3x600xf32>
    %105 = arith.subf %92, %104 : vector<3x600xf32>
    %106 = arith.mulf %105, %105 : vector<3x600xf32>
    %cst_55 = arith.constant dense<0.000000e+00> : vector<600xf32>
    %107 = vector.multi_reduction <add>, %106, %cst_55 [0] : vector<3x600xf32> to vector<600xf32>
    %108 = vector.shape_cast %107 : vector<600xf32> to vector<1x600xf32>
    %cst_56 = arith.constant 0.333333343 : f32
    %109 = vector.broadcast %cst_56 : f32 to vector<1x600xf32>
    %110 = arith.mulf %108, %109 : vector<1x600xf32>
    %cst_57 = arith.constant 9.99999974E-6 : f32
    %111 = vector.broadcast %cst_57 : f32 to vector<1x600xf32>
    %112 = arith.addf %110, %111 : vector<1x600xf32>
    %113 = math.rsqrt %112 : vector<1x600xf32>
    %114 = arith.mulf %98, %113 : vector<1x600xf32>
    %115 = vector.broadcast %114 : vector<1x600xf32> to vector<3x600xf32>
    %116 = arith.mulf %105, %115 : vector<3x600xf32>
    %117 = vector.broadcast %99 : vector<1x600xf32> to vector<3x600xf32>
    %118 = arith.addf %116, %117 : vector<3x600xf32>
    %cst_58 = arith.constant dense<0.000000e+00> : vector<600xf32>
    %119 = vector.multi_reduction <add>, %97, %cst_58 [0] : vector<3x600xf32> to vector<600xf32>
    %120 = vector.shape_cast %119 : vector<600xf32> to vector<1x600xf32>
    %cst_59 = arith.constant 0.333333343 : f32
    %121 = vector.broadcast %cst_59 : f32 to vector<1x600xf32>
    %122 = arith.mulf %120, %121 : vector<1x600xf32>
    %123 = vector.broadcast %122 : vector<1x600xf32> to vector<3x600xf32>
    %124 = arith.subf %97, %123 : vector<3x600xf32>
    %125 = arith.mulf %124, %124 : vector<3x600xf32>
    %cst_60 = arith.constant dense<0.000000e+00> : vector<600xf32>
    %126 = vector.multi_reduction <add>, %125, %cst_60 [0] : vector<3x600xf32> to vector<600xf32>
    %127 = vector.shape_cast %126 : vector<600xf32> to vector<1x600xf32>
    %cst_61 = arith.constant 0.333333343 : f32
    %128 = vector.broadcast %cst_61 : f32 to vector<1x600xf32>
    %129 = arith.mulf %127, %128 : vector<1x600xf32>
    %cst_62 = arith.constant 9.99999974E-6 : f32
    %130 = vector.broadcast %cst_62 : f32 to vector<1x600xf32>
    %131 = arith.addf %129, %130 : vector<1x600xf32>
    %132 = math.rsqrt %131 : vector<1x600xf32>
    %133 = arith.mulf %98, %132 : vector<1x600xf32>
    %134 = vector.broadcast %133 : vector<1x600xf32> to vector<3x600xf32>
    %135 = arith.mulf %124, %134 : vector<3x600xf32>
    %136 = vector.broadcast %99 : vector<1x600xf32> to vector<3x600xf32>
    %137 = arith.addf %135, %136 : vector<3x600xf32>
    %138 = vector.extract_strided_slice %118 {offsets = [0, 0], sizes = [3, 200], strides = [1, 1]} : vector<3x600xf32> to vector<3x200xf32>
    %139 = vector.extract_strided_slice %118 {offsets = [0, 200], sizes = [3, 200], strides = [1, 1]} : vector<3x600xf32> to vector<3x200xf32>
    %140 = vector.extract_strided_slice %118 {offsets = [0, 400], sizes = [3, 200], strides = [1, 1]} : vector<3x600xf32> to vector<3x200xf32>
    %141 = vector.extract_strided_slice %137 {offsets = [0, 0], sizes = [3, 200], strides = [1, 1]} : vector<3x600xf32> to vector<3x200xf32>
    %142 = vector.extract_strided_slice %137 {offsets = [0, 200], sizes = [3, 200], strides = [1, 1]} : vector<3x600xf32> to vector<3x200xf32>
    %143 = vector.extract_strided_slice %137 {offsets = [0, 400], sizes = [3, 200], strides = [1, 1]} : vector<3x600xf32> to vector<3x200xf32>
    %144 = arith.addf %138, %141 : vector<3x200xf32>
    %cst_63 = arith.constant 0.000000e+00 : f32
    %145 = vector.broadcast %cst_63 : f32 to vector<3x200xf32>
    %146 = arith.subf %145, %144 : vector<3x200xf32>
    %147 = math.exp %146 : vector<3x200xf32>
    %cst_64 = arith.constant 1.000000e+00 : f32
    %148 = vector.broadcast %cst_64 : f32 to vector<3x200xf32>
    %149 = arith.addf %148, %147 : vector<3x200xf32>
    %cst_65 = arith.constant 1.000000e+00 : f32
    %150 = vector.broadcast %cst_65 : f32 to vector<3x200xf32>
    %151 = arith.divf %150, %149 : vector<3x200xf32>
    %152 = arith.addf %139, %142 : vector<3x200xf32>
    %cst_66 = arith.constant 0.000000e+00 : f32
    %153 = vector.broadcast %cst_66 : f32 to vector<3x200xf32>
    %154 = arith.subf %153, %152 : vector<3x200xf32>
    %155 = math.exp %154 : vector<3x200xf32>
    %cst_67 = arith.constant 1.000000e+00 : f32
    %156 = vector.broadcast %cst_67 : f32 to vector<3x200xf32>
    %157 = arith.addf %156, %155 : vector<3x200xf32>
    %cst_68 = arith.constant 1.000000e+00 : f32
    %158 = vector.broadcast %cst_68 : f32 to vector<3x200xf32>
    %159 = arith.divf %158, %157 : vector<3x200xf32>
    %160 = arith.mulf %159, %143 : vector<3x200xf32>
    %161 = arith.addf %140, %160 : vector<3x200xf32>
    %162 = math.tanh %161 : vector<3x200xf32>
    %cst_69 = arith.constant 1.000000e+00 : f32
    %163 = vector.broadcast %cst_69 : f32 to vector<3x200xf32>
    %164 = arith.subf %163, %151 : vector<3x200xf32>
    %165 = arith.mulf %164, %87 : vector<3x200xf32>
    %166 = arith.mulf %151, %162 : vector<3x200xf32>
    %167 = arith.addf %165, %166 : vector<3x200xf32>
    %c1_70 = arith.constant 1 : index
    %c0_71 = arith.constant 0 : index
    %c0_72 = arith.constant 0 : index
    %168 = vector.load %arg14[%c1_70, %c0_71, %c0_72] : memref<2x3x200xf32, #tpu.memory_space<vmem>>, vector<1x3x200xf32>
    %169 = vector.shape_cast %168 : vector<1x3x200xf32> to vector<3x200xf32>
    %170 = vector.shape_cast %167 : vector<3x200xf32> to vector<1x3x200xf32>
    tpu.vector_store %arg14[%c1_70, %c0_71, %c0_72], %170 {strides = array<i32>} : memref<2x3x200xf32, #tpu.memory_space<vmem>>, vector<1x3x200xf32>,
    return
  }
}

</mosaic_0001>

<llo_original>
// kernel: tpu_custom_call.1
$region0: #{tpu_custom_call.1}
  #allocation0 [shape = 'u32[]', space=smem, size = 0x4, offset = 0x4, fixed_abs, tag = 'smem constant byte address 0x4 - core index']
  #allocation1 [shape = 'u32[144,128]{1,0:T(1,128)}', space=vmem, size = 0x12000, scoped, tag = 'internal scratch']
  %s0 = inlined_call_operand.hbm [shape: f32[3,20], index: 0, kind: input, shape index: {}]
  %s1 = inlined_call_operand.vmem [shape: f32[2,3,200], index: 1, kind: input, shape index: {}]
  %s2 = inlined_call_operand.hbm [shape: f32[20,600], index: 2, kind: input, shape index: {}]
  %s3 = inlined_call_operand.vmem [shape: f32[1,600], index: 3, kind: input, shape index: {}]
  %s4 = inlined_call_operand.hbm [shape: f32[200,600], index: 4, kind: input, shape index: {}]
  %s5 = inlined_call_operand.vmem [shape: f32[1,600], index: 5, kind: input, shape index: {}]
  %s6 = inlined_call_operand.vmem [shape: f32[1,600], index: 6, kind: input, shape index: {}]
  %s7 = inlined_call_operand.vmem [shape: f32[1,600], index: 7, kind: input, shape index: {}]
  %s8 = inlined_call_operand.hbm [shape: f32[200,600], index: 8, kind: input, shape index: {}]
  %s9 = inlined_call_operand.vmem [shape: f32[1,600], index: 9, kind: input, shape index: {}]
  %s10 = inlined_call_operand.hbm [shape: f32[200,600], index: 10, kind: input, shape index: {}]
  %s11 = inlined_call_operand.vmem [shape: f32[1,600], index: 11, kind: input, shape index: {}]
  %s12 = inlined_call_operand.vmem [shape: f32[1,600], index: 12, kind: input, shape index: {}]
  %s13 = inlined_call_operand.vmem [shape: f32[1,600], index: 13, kind: input, shape index: {}]
  %s14 = inlined_call_operand.vmem [shape: f32[2,3,200], index: 14, kind: output, shape index: {}]
  %s15 = sld [smem:[#allocation0]]
  $region86: #{tpu_custom_call.1} parent=0
    _
  %s17 = ssub.s32 1, %s15
  %s18 = scalar_select 0, %s17, %s15
  $region1: #{tpu_custom_call.1} parent=0
    #allocation2 [shape = 'u8[2048]{0}', space=vmem, size = 0x800, scoped, tag = 'input window, operand 0, single buffered']
    #allocation3 [shape = 's32[1]{0}', space=sflag, size = 0x4, scoped, tag = 'scoped memory for tpu_custom_call.1']
    #allocation4 [shape = 'u8[61440]{0}', space=vmem, size = 0xf000, scoped, tag = 'input window, operand 2, single buffered']
    #allocation5 [shape = 's32[1]{0}', space=sflag, size = 0x4, scoped, tag = 'scoped memory for tpu_custom_call.1']
    #allocation6 [shape = 'u8[512000]{0}', space=vmem, size = 0x7d000, scoped, tag = 'input window, operand 4, single buffered']
    #allocation7 [shape = 'u8[512000]{0}', space=vmem, size = 0x7d000, scoped, tag = 'input window, operand 8, single buffered']
    #allocation8 [shape = 's32[1]{0}', space=sflag, size = 0x4, scoped, tag = 'scoped memory for tpu_custom_call.1']
    #allocation9 [shape = 'u8[512000]{0}', space=vmem, size = 0x7d000, scoped, tag = 'input window, operand 10, single buffered']
    %19 = vsyncpa [#allocation3], 0
    %20 = vsyncpa [#allocation5], 0
    %21 = vsyncpa [#allocation8], 0
    // Predicated region
    $region2: #{tpu_custom_call.1} parent=1 // pred_check
      _
    $region3: #{tpu_custom_call.1} parent=1 // pred_check_branch
      %23 = sbr.rel (0) target = $region5
    $region4: #{tpu_custom_call.1} parent=1 // pred_region
      %s25 = ssub.s32 64, 64
      %26 = vsyncadd [#allocation3], %s25
      %s28 = sshll.u32 [#allocation2], 4
      %s29 = int_to_ptr.vmem [resolvable:$true] %s28
      %31 = dma.hbm_to_vmem [thread:$0]  %s0, 64, %s29, [#allocation3]
    $region5: #{tpu_custom_call.1} parent=1 // pred_fallthru
      _
    // Predicated region
    $region6: #{tpu_custom_call.1} parent=1 // pred_check
      _
    $region7: #{tpu_custom_call.1} parent=1 // pred_check_branch
      %33 = sbr.rel (0) target = $region9
    $region8: #{tpu_custom_call.1} parent=1 // pred_region
      _
    $region9: #{tpu_custom_call.1} parent=1 // pred_fallthru
      _
    // Predicated region
    $region10: #{tpu_custom_call.1} parent=1 // pred_check
      _
    $region11: #{tpu_custom_call.1} parent=1 // pred_check_branch
      %35 = sbr.rel (0) target = $region13
    $region12: #{tpu_custom_call.1} parent=1 // pred_region
      %s37 = ssub.s32 1920, 1920
      %38 = vsyncadd [#allocation5], %s37
      %s39 = sshll.u32 [#allocation4], 4
      %s40 = int_to_ptr.vmem [resolvable:$true] %s39
      %45 = dma.hbm_to_vmem [thread:$0]  %s2, 1920, %s40, [#allocation5], 640, 640, 40
    $region13: #{tpu_custom_call.1} parent=1 // pred_fallthru
      _
    // Predicated region
    $region14: #{tpu_custom_call.1} parent=1 // pred_check
      _
    $region15: #{tpu_custom_call.1} parent=1 // pred_check_branch
      %47 = sbr.rel (0) target = $region17
    $region16: #{tpu_custom_call.1} parent=1 // pred_region
      _
    $region17: #{tpu_custom_call.1} parent=1 // pred_fallthru
      _
    // Predicated region
    $region18: #{tpu_custom_call.1} parent=1 // pred_check
      _
    $region19: #{tpu_custom_call.1} parent=1 // pred_check_branch
      %49 = sbr.rel (0) target = $region21
    $region20: #{tpu_custom_call.1} parent=1 // pred_region
      %s51 = ssub.s32 16000, 16000
      %52 = vsyncadd [#allocation5], %s51
      %s53 = sshll.u32 [#allocation6], 4
      %s54 = int_to_ptr.vmem [resolvable:$true] %s53
      %59 = dma.hbm_to_vmem [thread:$0]  %s4, 16000, %s54, [#allocation5], 640, 640, 40
    $region21: #{tpu_custom_call.1} parent=1 // pred_fallthru
      _
    // Predicated region
    $region22: #{tpu_custom_call.1} parent=1 // pred_check
      _
    $region23: #{tpu_custom_call.1} parent=1 // pred_check_branch
      %61 = sbr.rel (0) target = $region25
    $region24: #{tpu_custom_call.1} parent=1 // pred_region
      _
    $region25: #{tpu_custom_call.1} parent=1 // pred_fallthru
      _
    // Predicated region
    $region26: #{tpu_custom_call.1} parent=1 // pred_check
      _
    $region27: #{tpu_custom_call.1} parent=1 // pred_check_branch
      %63 = sbr.rel (0) target = $region29
    $region28: #{tpu_custom_call.1} parent=1 // pred_region
      _
    $region29: #{tpu_custom_call.1} parent=1 // pred_fallthru
      _
    // Predicated region
    $region30: #{tpu_custom_call.1} parent=1 // pred_check
      _
    $region31: #{tpu_custom_call.1} parent=1 // pred_check_branch
      %65 = sbr.rel (0) target = $region33
    $region32: #{tpu_custom_call.1} parent=1 // pred_region
      _
    $region33: #{tpu_custom_call.1} parent=1 // pred_fallthru
      _
    // Predicated region
    $region34: #{tpu_custom_call.1} parent=1 // pred_check
      _
    $region35: #{tpu_custom_call.1} parent=1 // pred_check_branch
      %67 = sbr.rel (0) target = $region37
    $region36: #{tpu_custom_call.1} parent=1 // pred_region
      %s69 = ssub.s32 16000, 16000
      %70 = vsyncadd [#allocation8], %s69
      %s71 = sshll.u32 [#allocation7], 4
      %s72 = int_to_ptr.vmem [resolvable:$true] %s71
      %77 = dma.hbm_to_vmem [thread:$0]  %s8, 16000, %s72, [#allocation8], 640, 640, 40
    $region37: #{tpu_custom_call.1} parent=1 // pred_fallthru
      _
    // Predicated region
    $region38: #{tpu_custom_call.1} parent=1 // pred_check
      _
    $region39: #{tpu_custom_call.1} parent=1 // pred_check_branch
      %79 = sbr.rel (0) target = $region41
    $region40: #{tpu_custom_call.1} parent=1 // pred_region
      _
    $region41: #{tpu_custom_call.1} parent=1 // pred_fallthru
      _
    // Predicated region
    $region42: #{tpu_custom_call.1} parent=1 // pred_check
      _
    $region43: #{tpu_custom_call.1} parent=1 // pred_check_branch
      %81 = sbr.rel (0) target = $region45
    $region44: #{tpu_custom_call.1} parent=1 // pred_region
      %s83 = ssub.s32 16000, 16000
      %84 = vsyncadd [#allocation8], %s83
      %s85 = sshll.u32 [#allocation9], 4
      %s86 = int_to_ptr.vmem [resolvable:$true] %s85
      %91 = dma.hbm_to_vmem [thread:$0]  %s10, 16000, %s86, [#allocation8], 640, 640, 40
    $region45: #{tpu_custom_call.1} parent=1 // pred_fallthru
      _
    // Predicated region
    $region46: #{tpu_custom_call.1} parent=1 // pred_check
      _
    $region47: #{tpu_custom_call.1} parent=1 // pred_check_branch
      %93 = sbr.rel (0) target = $region49
    $region48: #{tpu_custom_call.1} parent=1 // pred_region
      _
    $region49: #{tpu_custom_call.1} parent=1 // pred_fallthru
      _
    // Predicated region
    $region50: #{tpu_custom_call.1} parent=1 // pred_check
      _
    $region51: #{tpu_custom_call.1} parent=1 // pred_check_branch
      %95 = sbr.rel (0) target = $region53
    $region52: #{tpu_custom_call.1} parent=1 // pred_region
      _
    $region53: #{tpu_custom_call.1} parent=1 // pred_fallthru
      _
    // Predicated region
    $region54: #{tpu_custom_call.1} parent=1 // pred_check
      _
    $region55: #{tpu_custom_call.1} parent=1 // pred_check_branch
      %97 = sbr.rel (0) target = $region57
    $region56: #{tpu_custom_call.1} parent=1 // pred_region
      _
    $region57: #{tpu_custom_call.1} parent=1 // pred_fallthru
      _
    // Predicated region
    $region58: #{tpu_custom_call.1} parent=1 // pred_check
      _
    $region59: #{tpu_custom_call.1} parent=1 // pred_check_branch
      %99 = sbr.rel (0) target = $region61
    $region60: #{tpu_custom_call.1} parent=1 // pred_region
      %100 = dma.done [#allocation3], 64
    $region61: #{tpu_custom_call.1} parent=1 // pred_fallthru
      _
    // Predicated region
    $region62: #{tpu_custom_call.1} parent=1 // pred_check
      _
    $region63: #{tpu_custom_call.1} parent=1 // pred_check_branch
      %102 = sbr.rel (0) target = $region65
    $region64: #{tpu_custom_call.1} parent=1 // pred_region
      %103 = dma.done [#allocation5], 1920
    $region65: #{tpu_custom_call.1} parent=1 // pred_fallthru
      _
    // Predicated region
    $region66: #{tpu_custom_call.1} parent=1 // pred_check
      _
    $region67: #{tpu_custom_call.1} parent=1 // pred_check_branch
      %105 = sbr.rel (0) target = $region69
    $region68: #{tpu_custom_call.1} parent=1 // pred_region
      %106 = dma.done [#allocation5], 16000
    $region69: #{tpu_custom_call.1} parent=1 // pred_fallthru
      _
    // Predicated region
    $region70: #{tpu_custom_call.1} parent=1 // pred_check
      _
    $region71: #{tpu_custom_call.1} parent=1 // pred_check_branch
      %108 = sbr.rel (0) target = $region73
    $region72: #{tpu_custom_call.1} parent=1 // pred_region
      %109 = dma.done [#allocation8], 16000
    $region73: #{tpu_custom_call.1} parent=1 // pred_fallthru
      _
    // Predicated region
    $region74: #{tpu_custom_call.1} parent=1 // pred_check
      _
    $region75: #{tpu_custom_call.1} parent=1 // pred_check_branch
      %111 = sbr.rel (0) target = $region77
    $region76: #{tpu_custom_call.1} parent=1 // pred_region
      %112 = dma.done [#allocation8], 16000
    $region77: #{tpu_custom_call.1} parent=1 // pred_fallthru
      _
    %v113 = vld [vmem:[#allocation2] sm:$0x7]
    %v114 = vld [vmem:[%s1] sm:$0x77]
    %v115 = vld [vmem:[#allocation4] sm:$0xff]
    %v116 = vld [vmem:[#allocation4 + $0x8] sm:$0xff]
    %v117 = vld [vmem:[#allocation4 + $0x10] sm:$0xff]
    %v118 = vld [vmem:[#allocation4 + $0x18] sm:$0xff]
    %v119 = vld [vmem:[#allocation4 + $0x20] sm:$0xff]
    %v120 = vld [vmem:[#allocation4 + $0x28] sm:$0xff]
    %v121 = vld [vmem:[#allocation4 + $0x30] sm:$0xff]
    %v122 = vld [vmem:[#allocation4 + $0x38] sm:$0xff]
    %v123 = vld [vmem:[#allocation4 + $0x40] sm:$0xff]
    %v124 = vld [vmem:[#allocation4 + $0x48] sm:$0xff]
    %v125 = vld [vmem:[#allocation4 + $0x50] sm:$0xf]
    %v126 = vld [vmem:[#allocation4 + $0x58] sm:$0xf]
    %v127 = vld [vmem:[#allocation4 + $0x60] sm:$0xf]
    %v128 = vld [vmem:[#allocation4 + $0x68] sm:$0xf]
    %v129 = vld [vmem:[#allocation4 + $0x70] sm:$0xf]
    %v130 = vld [vmem:[%s3] sm:$0x1f]
    %v132 = vlaneseq
    %v133 = vshrl.u32 %v132, 7
    %v134 = vsub.s32 0, %v133
    %v135 = vrot.slane %v130, %v134
    %v136 = vlaneseq
    %v137 = vshrl.u32 %v136, 7
    %v138 = vsub.s32 1, %v137
    %v139 = vrot.slane %v130, %v138
    %v140 = vlaneseq
    %v141 = vshrl.u32 %v140, 7
    %v142 = vsub.s32 2, %v141
    %v143 = vrot.slane %v130, %v142
    %v144 = vlaneseq
    %v145 = vshrl.u32 %v144, 7
    %v146 = vsub.s32 3, %v145
    %v147 = vrot.slane %v130, %v146
    %v148 = vlaneseq
    %v149 = vshrl.u32 %v148, 7
    %v150 = vsub.s32 4, %v149
    %v151 = vrot.slane %v130, %v150
    %vm157 = vcmask 162816
    %v159 = vsel %vm157, %v113, 0
    %vm161 = vcmask 1043456
    %v163 = vsel %vm161, %v125, 0
    %v166 = vsel %vm161, %v126, 0
    %v169 = vsel %vm161, %v127, 0
    %v172 = vsel %vm161, %v128, 0
    %v175 = vsel %vm161, %v129, 0
    %177 = vmatprep.subr.mxu0 %v116
    %178 = vmatpush1.msra.mxu0 %v115
    %179 = vmatprep.subr.mxu0 %v121
    %180 = vmatpush1.msra.mxu0 %v120
    %181 = vmatprep.subr.mxu0 %v166
    %182 = vmatpush1.msra.mxu0 %v163
    %183 = vmatprep.subr.mxu0 0.0
    %184 = vmatpush1.msra.mxu0 0.0
    %185 = vmatprep.subr.mxu0 0.0
    %186 = vmatpush1.msra.mxu0 0.0
    %187 = vmatprep.subr.mxu0 0.0
    %188 = vmatpush1.msra.mxu0 0.0
    %189 = vmatprep.subr.mxu0 0.0
    %190 = vmatpush1.msra.mxu0 0.0
    %191 = vmatprep.subr.mxu0 0.0
    %192 = vmatpush1.msra.mxu0 0.0
    %193 = vmatprep.subr.mxu0 0.0
    %194 = vmatpush1.msra.mxu0 0.0
    %195 = vmatprep.subr.mxu0 0.0
    %196 = vmatpush1.msra.mxu0 0.0
    %197 = vmatprep.subr.mxu0 0.0
    %198 = vmatpush1.msra.mxu0 0.0
    %199 = vmatprep.subr.mxu0 0.0
    %200 = vmatpush1.msra.mxu0 0.0
    %201 = vmatprep.subr.mxu0 0.0
    %202 = vmatpush1.msra.mxu0 0.0
    %203 = vmatprep.subr.mxu0 0.0
    %204 = vmatpush1.msra.mxu0 0.0
    %205 = vmatprep.subr.mxu0 0.0
    %206 = vmatpush1.msra.mxu0 0.0
    %207 = vmatprep.subr.mxu0 0.0
    %208 = vmatpush1.msra.mxu0 0.0
    %209 = vmatprep.subr.mxu0 0.0
    %210 = vmatpush1.msra.mxu0 0.0
    %211 = vmatprep.subr.mxu0 0.0
    %212 = vmatpush1.msra.mxu0 0.0
    %213 = vmatprep.subr.mxu0 0.0
    %214 = vmatpush1.msra.mxu0 0.0
    %215 = vmatprep.subr.mxu0 0.0
    %216 = vmatpush1.msra.mxu0 0.0
    %217 = vmatprep.subr.mxu0 0.0
    %218 = vmatpush1.msra.mxu0 0.0
    %219 = vmatprep.subr.mxu0 0.0
    %220 = vmatpush1.msra.mxu0 0.0
    %221 = vmatprep.subr.mxu0 0.0
    %222 = vmatpush1.msra.mxu0 0.0
    %223 = vmatprep.subr.mxu0 0.0
    %224 = vmatpush1.msra.mxu0 0.0
    %225 = vmatprep.subr.mxu0 0.0
    %226 = vmatpush1.msra.mxu0 0.0
    %227 = vmatprep.subr.mxu0 0.0
    %228 = vmatpush1.msra.mxu0 0.0
    %229 = vmatprep.subr.mxu0 0.0
    %230 = vmatpush1.msra.mxu0 0.0
    %231 = vmatprep.subr.mxu0 0.0
    %232 = vmatpush1.msra.mxu0 0.0
    %233 = vmatprep.subr.mxu0 0.0
    %234 = vmatpush1.msra.mxu0 0.0
    %235 = vmatprep.subr.mxu0 0.0
    %236 = vmatpush1.msra.mxu0 0.0
    %237 = vmatprep.subr.mxu0 0.0
    %238 = vmatpush1.msra.mxu0 0.0
    %239 = vmatprep.subr.mxu0 0.0
    %240 = vmatpush1.msra.mxu0 0.0
    %241 = vmatprep.mubr.f32.mxu0 0.0
    %242 = vmatmul.mubr.f32.gmra.mrb[0].mxu0 %v159
    %v243 = vpop.f32.mrb[0].mxu0
    %v244 = vadd.f32 %v135, %v243
    %v245 = vpop.f32.mrb[0].mxu0
    %v246 = vadd.f32 %v139, %v245
    %247 = vdwg.mxu0
    %248 = vmatprep.subr.mxu0 %v118
    %249 = vmatpush1.msra.mxu0 %v117
    %250 = vmatprep.subr.mxu0 %v123
    %251 = vmatpush1.msra.mxu0 %v122
    %252 = vmatprep.subr.mxu0 %v172
    %253 = vmatpush1.msra.mxu0 %v169
    %254 = vmatprep.subr.mxu0 0.0
    %255 = vmatpush1.msra.mxu0 0.0
    %256 = vmatprep.subr.mxu0 0.0
    %257 = vmatpush1.msra.mxu0 0.0
    %258 = vmatprep.subr.mxu0 0.0
    %259 = vmatpush1.msra.mxu0 0.0
    %260 = vmatprep.subr.mxu0 0.0
    %261 = vmatpush1.msra.mxu0 0.0
    %262 = vmatprep.subr.mxu0 0.0
    %263 = vmatpush1.msra.mxu0 0.0
    %264 = vmatprep.subr.mxu0 0.0
    %265 = vmatpush1.msra.mxu0 0.0
    %266 = vmatprep.subr.mxu0 0.0
    %267 = vmatpush1.msra.mxu0 0.0
    %268 = vmatprep.subr.mxu0 0.0
    %269 = vmatpush1.msra.mxu0 0.0
    %270 = vmatprep.subr.mxu0 0.0
    %271 = vmatpush1.msra.mxu0 0.0
    %272 = vmatprep.subr.mxu0 0.0
    %273 = vmatpush1.msra.mxu0 0.0
    %274 = vmatprep.subr.mxu0 0.0
    %275 = vmatpush1.msra.mxu0 0.0
    %276 = vmatprep.subr.mxu0 0.0
    %277 = vmatpush1.msra.mxu0 0.0
    %278 = vmatprep.subr.mxu0 0.0
    %279 = vmatpush1.msra.mxu0 0.0
    %280 = vmatprep.subr.mxu0 0.0
    %281 = vmatpush1.msra.mxu0 0.0
    %282 = vmatprep.subr.mxu0 0.0
    %283 = vmatpush1.msra.mxu0 0.0
    %284 = vmatprep.subr.mxu0 0.0
    %285 = vmatpush1.msra.mxu0 0.0
    %286 = vmatprep.subr.mxu0 0.0
    %287 = vmatpush1.msra.mxu0 0.0
    %288 = vmatprep.subr.mxu0 0.0
    %289 = vmatpush1.msra.mxu0 0.0
    %290 = vmatprep.subr.mxu0 0.0
    %291 = vmatpush1.msra.mxu0 0.0
    %292 = vmatprep.subr.mxu0 0.0
    %293 = vmatpush1.msra.mxu0 0.0
    %294 = vmatprep.subr.mxu0 0.0
    %295 = vmatpush1.msra.mxu0 0.0
    %296 = vmatprep.subr.mxu0 0.0
    %297 = vmatpush1.msra.mxu0 0.0
    %298 = vmatprep.subr.mxu0 0.0
    %299 = vmatpush1.msra.mxu0 0.0
    %300 = vmatprep.subr.mxu0 0.0
    %301 = vmatpush1.msra.mxu0 0.0
    %302 = vmatprep.subr.mxu0 0.0
    %303 = vmatpush1.msra.mxu0 0.0
    %304 = vmatprep.subr.mxu0 0.0
    %305 = vmatpush1.msra.mxu0 0.0
    %306 = vmatprep.subr.mxu0 0.0
    %307 = vmatpush1.msra.mxu0 0.0
    %308 = vmatprep.subr.mxu0 0.0
    %309 = vmatpush1.msra.mxu0 0.0
    %310 = vmatprep.subr.mxu0 0.0
    %311 = vmatpush1.msra.mxu0 0.0
    %312 = vmatprep.mubr.f32.mxu0 0.0
    %313 = vmatmul.mubr.f32.gmra.mrb[0].mxu0 %v159
    %v314 = vpop.f32.mrb[0].mxu0
    %v315 = vadd.f32 %v143, %v314
    %v316 = vpop.f32.mrb[0].mxu0
    %v317 = vadd.f32 %v147, %v316
    %318 = vdwg.mxu0
    %319 = vmatprep.subr.mxu0 0.0
    %320 = vmatpush1.msra.mxu0 %v119
    %321 = vmatprep.subr.mxu0 0.0
    %322 = vmatpush1.msra.mxu0 %v124
    %323 = vmatprep.subr.mxu0 0.0
    %324 = vmatpush1.msra.mxu0 %v175
    %325 = vmatprep.subr.mxu0 0.0
    %326 = vmatpush1.msra.mxu0 0.0
    %327 = vmatprep.subr.mxu0 0.0
    %328 = vmatpush1.msra.mxu0 0.0
    %329 = vmatprep.subr.mxu0 0.0
    %330 = vmatpush1.msra.mxu0 0.0
    %331 = vmatprep.subr.mxu0 0.0
    %332 = vmatpush1.msra.mxu0 0.0
    %333 = vmatprep.subr.mxu0 0.0
    %334 = vmatpush1.msra.mxu0 0.0
    %335 = vmatprep.subr.mxu0 0.0
    %336 = vmatpush1.msra.mxu0 0.0
    %337 = vmatprep.subr.mxu0 0.0
    %338 = vmatpush1.msra.mxu0 0.0
    %339 = vmatprep.subr.mxu0 0.0
    %340 = vmatpush1.msra.mxu0 0.0
    %341 = vmatprep.subr.mxu0 0.0
    %342 = vmatpush1.msra.mxu0 0.0
    %343 = vmatprep.subr.mxu0 0.0
    %344 = vmatpush1.msra.mxu0 0.0
    %345 = vmatprep.subr.mxu0 0.0
    %346 = vmatpush1.msra.mxu0 0.0
    %347 = vmatprep.subr.mxu0 0.0
    %348 = vmatpush1.msra.mxu0 0.0
    %349 = vmatprep.subr.mxu0 0.0
    %350 = vmatpush1.msra.mxu0 0.0
    %351 = vmatprep.subr.mxu0 0.0
    %352 = vmatpush1.msra.mxu0 0.0
    %353 = vmatprep.subr.mxu0 0.0
    %354 = vmatpush1.msra.mxu0 0.0
    %355 = vmatprep.subr.mxu0 0.0
    %356 = vmatpush1.msra.mxu0 0.0
    %357 = vmatprep.subr.mxu0 0.0
    %358 = vmatpush1.msra.mxu0 0.0
    %359 = vmatprep.subr.mxu0 0.0
    %360 = vmatpush1.msra.mxu0 0.0
    %361 = vmatprep.subr.mxu0 0.0
    %362 = vmatpush1.msra.mxu0 0.0
    %363 = vmatprep.subr.mxu0 0.0
    %364 = vmatpush1.msra.mxu0 0.0
    %365 = vmatprep.subr.mxu0 0.0
    %366 = vmatpush1.msra.mxu0 0.0
    %367 = vmatprep.subr.mxu0 0.0
    %368 = vmatpush1.msra.mxu0 0.0
    %369 = vmatprep.subr.mxu0 0.0
    %370 = vmatpush1.msra.mxu0 0.0
    %371 = vmatprep.subr.mxu0 0.0
    %372 = vmatpush1.msra.mxu0 0.0
    %373 = vmatprep.subr.mxu0 0.0
    %374 = vmatpush1.msra.mxu0 0.0
    %375 = vmatprep.subr.mxu0 0.0
    %376 = vmatpush1.msra.mxu0 0.0
    %377 = vmatprep.subr.mxu0 0.0
    %378 = vmatpush1.msra.mxu0 0.0
    %379 = vmatprep.subr.mxu0 0.0
    %380 = vmatpush1.msra.mxu0 0.0
    %381 = vmatprep.subr.mxu0 0.0
    %382 = vmatpush1.msra.mxu0 0.0
    %383 = vmatprep.mubr.f32.mxu0 0.0
    %384 = vmatmul.mubr.f32.gmra.mrb[0].mxu0 %v159
    %v385 = vpop.f32.mrb[0].mxu0
    %v386 = vadd.f32 %v151, %v385
    %v387 = vpop.f32.mrb[0].mxu0
    %388 = vdwg.mxu0
    %v389 = vld [vmem:[#allocation6] sm:$0xff]
    %v390 = vld [vmem:[#allocation6 + $0x8] sm:$0xff]
    %v391 = vld [vmem:[#allocation6 + $0x10] sm:$0xff]
    %v392 = vld [vmem:[#allocation6 + $0x18] sm:$0xff]
    %v393 = vld [vmem:[#allocation6 + $0x20] sm:$0xff]
    %v394 = vld [vmem:[#allocation6 + $0x28] sm:$0xff]
    %v395 = vld [vmem:[#allocation6 + $0x30] sm:$0xff]
    %v396 = vld [vmem:[#allocation6 + $0x38] sm:$0xff]
    %v397 = vld [vmem:[#allocation6 + $0x40] sm:$0xff]
    %v398 = vld [vmem:[#allocation6 + $0x48] sm:$0xff]
    %v399 = vld [vmem:[#allocation6 + $0x50] sm:$0xff]
    %v400 = vld [vmem:[#allocation6 + $0x58] sm:$0xff]
    %v401 = vld [vmem:[#allocation6 + $0x60] sm:$0xff]
    %v402 = vld [vmem:[#allocation6 + $0x68] sm:$0xff]
    %v403 = vld [vmem:[#allocation6 + $0x70] sm:$0xff]
    %v404 = vld [vmem:[#allocation6 + $0x78] sm:$0xff]
    %v405 = vld [vmem:[#allocation6 + $0x80] sm:$0xff]
    %v406 = vld [vmem:[#allocation6 + $0x88] sm:$0xff]
    %v407 = vld [vmem:[#allocation6 + $0x90] sm:$0xff]
    %v408 = vld [vmem:[#allocation6 + $0x98] sm:$0xff]
    %v409 = vld [vmem:[#allocation6 + $0xa0] sm:$0xff]
    %v410 = vld [vmem:[#allocation6 + $0xa8] sm:$0xff]
    %v411 = vld [vmem:[#allocation6 + $0xb0] sm:$0xff]
    %v412 = vld [vmem:[#allocation6 + $0xb8] sm:$0xff]
    %v413 = vld [vmem:[#allocation6 + $0xc0] sm:$0xff]
    %v414 = vld [vmem:[#allocation6 + $0xc8] sm:$0xff]
    %v415 = vld [vmem:[#allocation6 + $0xd0] sm:$0xff]
    %v416 = vld [vmem:[#allocation6 + $0xd8] sm:$0xff]
    %v417 = vld [vmem:[#allocation6 + $0xe0] sm:$0xff]
    %v418 = vld [vmem:[#allocation6 + $0xe8] sm:$0xff]
    %v419 = vld [vmem:[#allocation6 + $0xf0] sm:$0xff]
    %v420 = vld [vmem:[#allocation6 + $0xf8] sm:$0xff]
    %v421 = vld [vmem:[#allocation6 + $0x100] sm:$0xff]
    %v422 = vld [vmem:[#allocation6 + $0x108] sm:$0xff]
    %v423 = vld [vmem:[#allocation6 + $0x110] sm:$0xff]
    %v424 = vld [vmem:[#allocation6 + $0x118] sm:$0xff]
    %v425 = vld [vmem:[#allocation6 + $0x120] sm:$0xff]
    %v426 = vld [vmem:[#allocation6 + $0x128] sm:$0xff]
    %v427 = vld [vmem:[#allocation6 + $0x130] sm:$0xff]
    %v428 = vld [vmem:[#allocation6 + $0x138] sm:$0xff]
    %v429 = vld [vmem:[#allocation6 + $0x140] sm:$0xff]
    %v430 = vld [vmem:[#allocation6 + $0x148] sm:$0xff]
    %v431 = vld [vmem:[#allocation6 + $0x150] sm:$0xff]
    %v432 = vld [vmem:[#allocation6 + $0x158] sm:$0xff]
    %v433 = vld [vmem:[#allocation6 + $0x160] sm:$0xff]
    %v434 = vld [vmem:[#allocation6 + $0x168] sm:$0xff]
    %v435 = vld [vmem:[#allocation6 + $0x170] sm:$0xff]
    %v436 = vld [vmem:[#allocation6 + $0x178] sm:$0xff]
    %v437 = vld [vmem:[#allocation6 + $0x180] sm:$0xff]
    %v438 = vld [vmem:[#allocation6 + $0x188] sm:$0xff]
    %v439 = vld [vmem:[#allocation6 + $0x190] sm:$0xff]
    %v440 = vld [vmem:[#allocation6 + $0x198] sm:$0xff]
    %v441 = vld [vmem:[#allocation6 + $0x1a0] sm:$0xff]
    %v442 = vld [vmem:[#allocation6 + $0x1a8] sm:$0xff]
    %v443 = vld [vmem:[#allocation6 + $0x1b0] sm:$0xff]
    %v444 = vld [vmem:[#allocation6 + $0x1b8] sm:$0xff]
    %v445 = vld [vmem:[#allocation6 + $0x1c0] sm:$0xff]
    %v446 = vld [vmem:[#allocation6 + $0x1c8] sm:$0xff]
    %v447 = vld [vmem:[#allocation6 + $0x1d0] sm:$0xff]
    %v448 = vld [vmem:[#allocation6 + $0x1d8] sm:$0xff]
    %v449 = vld [vmem:[#allocation6 + $0x1e0] sm:$0xff]
    %v450 = vld [vmem:[#allocation6 + $0x1e8] sm:$0xff]
    %v451 = vld [vmem:[#allocation6 + $0x1f0] sm:$0xff]
    %v452 = vld [vmem:[#allocation6 + $0x1f8] sm:$0xff]
    %v453 = vld [vmem:[#allocation6 + $0x200] sm:$0xff]
    %v454 = vld [vmem:[#allocation6 + $0x208] sm:$0xff]
    %v455 = vld [vmem:[#allocation6 + $0x210] sm:$0xff]
    %v456 = vld [vmem:[#allocation6 + $0x218] sm:$0xff]
    %v457 = vld [vmem:[#allocation6 + $0x220] sm:$0xff]
    %v458 = vld [vmem:[#allocation6 + $0x228] sm:$0xff]
    %v459 = vld [vmem:[#allocation6 + $0x230] sm:$0xff]
    %v460 = vld [vmem:[#allocation6 + $0x238] sm:$0xff]
    %v461 = vld [vmem:[#allocation6 + $0x240] sm:$0xff]
    %v462 = vld [vmem:[#allocation6 + $0x248] sm:$0xff]
    %v463 = vld [vmem:[#allocation6 + $0x250] sm:$0xff]
    %v464 = vld [vmem:[#allocation6 + $0x258] sm:$0xff]
    %v465 = vld [vmem:[#allocation6 + $0x260] sm:$0xff]
    %v466 = vld [vmem:[#allocation6 + $0x268] sm:$0xff]
    %v467 = vld [vmem:[#allocation6 + $0x270] sm:$0xff]
    %v468 = vld [vmem:[#allocation6 + $0x278] sm:$0xff]
    %v469 = vld [vmem:[#allocation6 + $0x280] sm:$0xff]
    %v470 = vld [vmem:[#allocation6 + $0x288] sm:$0xff]
    %v471 = vld [vmem:[#allocation6 + $0x290] sm:$0xff]
    %v472 = vld [vmem:[#allocation6 + $0x298] sm:$0xff]
    %v473 = vld [vmem:[#allocation6 + $0x2a0] sm:$0xff]
    %v474 = vld [vmem:[#allocation6 + $0x2a8] sm:$0xff]
    %v475 = vld [vmem:[#allocation6 + $0x2b0] sm:$0xff]
    %v476 = vld [vmem:[#allocation6 + $0x2b8] sm:$0xff]
    %v477 = vld [vmem:[#allocation6 + $0x2c0] sm:$0xff]
    %v478 = vld [vmem:[#allocation6 + $0x2c8] sm:$0xff]
    %v479 = vld [vmem:[#allocation6 + $0x2d0] sm:$0xff]
    %v480 = vld [vmem:[#allocation6 + $0x2d8] sm:$0xff]
    %v481 = vld [vmem:[#allocation6 + $0x2e0] sm:$0xff]
    %v482 = vld [vmem:[#allocation6 + $0x2e8] sm:$0xff]
    %v483 = vld [vmem:[#allocation6 + $0x2f0] sm:$0xff]
    %v484 = vld [vmem:[#allocation6 + $0x2f8] sm:$0xff]
    %v485 = vld [vmem:[#allocation6 + $0x300] sm:$0xff]
    %v486 = vld [vmem:[#allocation6 + $0x308] sm:$0xff]
    %v487 = vld [vmem:[#allocation6 + $0x310] sm:$0xff]
    %v488 = vld [vmem:[#allocation6 + $0x318] sm:$0xff]
    %v489 = vld [vmem:[#allocation6 + $0x320] sm:$0xff]
    %v490 = vld [vmem:[#allocation6 + $0x328] sm:$0xff]
    %v491 = vld [vmem:[#allocation6 + $0x330] sm:$0xff]
    %v492 = vld [vmem:[#allocation6 + $0x338] sm:$0xff]
    %v493 = vld [vmem:[#allocation6 + $0x340] sm:$0xff]
    %v494 = vld [vmem:[#allocation6 + $0x348] sm:$0xff]
    %v495 = vld [vmem:[#allocation6 + $0x350] sm:$0xff]
    %v496 = vld [vmem:[#allocation6 + $0x358] sm:$0xff]
    %v497 = vld [vmem:[#allocation6 + $0x360] sm:$0xff]
    %v498 = vld [vmem:[#allocation6 + $0x368] sm:$0xff]
    %v499 = vld [vmem:[#allocation6 + $0x370] sm:$0xff]
    %v500 = vld [vmem:[#allocation6 + $0x378] sm:$0xff]
    %v501 = vld [vmem:[#allocation6 + $0x380] sm:$0xff]
    %v502 = vld [vmem:[#allocation6 + $0x388] sm:$0xff]
    %v503 = vld [vmem:[#allocation6 + $0x390] sm:$0xff]
    %v504 = vld [vmem:[#allocation6 + $0x398] sm:$0xff]
    %v505 = vld [vmem:[#allocation6 + $0x3a0] sm:$0xff]
    %v506 = vld [vmem:[#allocation6 + $0x3a8] sm:$0xff]
    %v507 = vld [vmem:[#allocation6 + $0x3b0] sm:$0xff]
    %v508 = vld [vmem:[#allocation6 + $0x3b8] sm:$0xff]
    %v509 = vld [vmem:[#allocation6 + $0x3c0] sm:$0xff]
    %v510 = vld [vmem:[#allocation6 + $0x3c8] sm:$0xff]
    %v511 = vld [vmem:[#allocation6 + $0x3d0] sm:$0xff]
    %v512 = vld [vmem:[#allocation6 + $0x3d8] sm:$0xff]
    %v513 = vld [vmem:[#allocation6 + $0x3e0] sm:$0xff]
    %v514 = vld [vmem:[%s5] sm:$0x1f]
    %v516 = vlaneseq
    %v517 = vshrl.u32 %v516, 7
    %v518 = vsub.s32 0, %v517
    %v519 = vrot.slane %v514, %v518
    %v520 = vlaneseq
    %v521 = vshrl.u32 %v520, 7
    %v522 = vsub.s32 1, %v521
    %v523 = vrot.slane %v514, %v522
    %v524 = vlaneseq
    %v525 = vshrl.u32 %v524, 7
    %v526 = vsub.s32 2, %v525
    %v527 = vrot.slane %v514, %v526
    %v528 = vlaneseq
    %v529 = vshrl.u32 %v528, 7
    %v530 = vsub.s32 3, %v529
    %v531 = vrot.slane %v514, %v530
    %v532 = vlaneseq
    %v533 = vshrl.u32 %v532, 7
    %v534 = vsub.s32 4, %v533
    %v535 = vrot.slane %v514, %v534
    %v542 = vcombine.high %v114, %v114
    %vm543 = vcmask 588800
    %v544 = vsel %vm543, %v542, 0
    %546 = vmatprep.subr.mxu0 %v390
    %547 = vmatpush1.msra.mxu0 %v389
    %548 = vmatprep.subr.mxu0 %v395
    %549 = vmatpush1.msra.mxu0 %v394
    %550 = vmatprep.subr.mxu0 %v400
    %551 = vmatpush1.msra.mxu0 %v399
    %552 = vmatprep.subr.mxu0 %v405
    %553 = vmatpush1.msra.mxu0 %v404
    %554 = vmatprep.subr.mxu0 %v410
    %555 = vmatpush1.msra.mxu0 %v409
    %556 = vmatprep.subr.mxu0 %v415
    %557 = vmatpush1.msra.mxu0 %v414
    %558 = vmatprep.subr.mxu0 %v420
    %559 = vmatpush1.msra.mxu0 %v419
    %560 = vmatprep.subr.mxu0 %v425
    %561 = vmatpush1.msra.mxu0 %v424
    %562 = vmatprep.subr.mxu0 %v430
    %563 = vmatpush1.msra.mxu0 %v429
    %564 = vmatprep.subr.mxu0 %v435
    %565 = vmatpush1.msra.mxu0 %v434
    %566 = vmatprep.subr.mxu0 %v440
    %567 = vmatpush1.msra.mxu0 %v439
    %568 = vmatprep.subr.mxu0 %v445
    %569 = vmatpush1.msra.mxu0 %v444
    %570 = vmatprep.subr.mxu0 %v450
    %571 = vmatpush1.msra.mxu0 %v449
    %572 = vmatprep.subr.mxu0 %v455
    %573 = vmatpush1.msra.mxu0 %v454
    %574 = vmatprep.subr.mxu0 %v460
    %575 = vmatpush1.msra.mxu0 %v459
    %576 = vmatprep.subr.mxu0 %v465
    %577 = vmatpush1.msra.mxu0 %v464
    %578 = vmatprep.subr.mxu0 %v470
    %579 = vmatpush1.msra.mxu0 %v469
    %580 = vmatprep.subr.mxu0 %v475
    %581 = vmatpush1.msra.mxu0 %v474
    %582 = vmatprep.subr.mxu0 %v480
    %583 = vmatpush1.msra.mxu0 %v479
    %584 = vmatprep.subr.mxu0 %v485
    %585 = vmatpush1.msra.mxu0 %v484
    %586 = vmatprep.subr.mxu0 %v490
    %587 = vmatpush1.msra.mxu0 %v489
    %588 = vmatprep.subr.mxu0 %v495
    %589 = vmatpush1.msra.mxu0 %v494
    %590 = vmatprep.subr.mxu0 %v500
    %591 = vmatpush1.msra.mxu0 %v499
    %592 = vmatprep.subr.mxu0 %v505
    %593 = vmatpush1.msra.mxu0 %v504
    %594 = vmatprep.subr.mxu0 %v510
    %595 = vmatpush1.msra.mxu0 %v509
    %596 = vmatprep.subr.mxu0 0.0
    %597 = vmatpush1.msra.mxu0 0.0
    %598 = vmatprep.subr.mxu0 0.0
    %599 = vmatpush1.msra.mxu0 0.0
    %600 = vmatprep.subr.mxu0 0.0
    %601 = vmatpush1.msra.mxu0 0.0
    %602 = vmatprep.subr.mxu0 0.0
    %603 = vmatpush1.msra.mxu0 0.0
    %604 = vmatprep.subr.mxu0 0.0
    %605 = vmatpush1.msra.mxu0 0.0
    %606 = vmatprep.subr.mxu0 0.0
    %607 = vmatpush1.msra.mxu0 0.0
    %608 = vmatprep.subr.mxu0 0.0
    %609 = vmatpush1.msra.mxu0 0.0
    %610 = vmatprep.mubr.f32.mxu0 %v544
    %611 = vmatmul.mubr.f32.gmra.mrb[0].mxu0 %v114
    %v612 = vpop.f32.mrb[0].mxu0
    %v613 = vadd.f32 %v519, %v612
    %v614 = vpop.f32.mrb[0].mxu0
    %v615 = vadd.f32 %v523, %v614
    %616 = vdwg.mxu0
    %617 = vmatprep.subr.mxu0 %v392
    %618 = vmatpush1.msra.mxu0 %v391
    %619 = vmatprep.subr.mxu0 %v397
    %620 = vmatpush1.msra.mxu0 %v396
    %621 = vmatprep.subr.mxu0 %v402
    %622 = vmatpush1.msra.mxu0 %v401
    %623 = vmatprep.subr.mxu0 %v407
    %624 = vmatpush1.msra.mxu0 %v406
    %625 = vmatprep.subr.mxu0 %v412
    %626 = vmatpush1.msra.mxu0 %v411
    %627 = vmatprep.subr.mxu0 %v417
    %628 = vmatpush1.msra.mxu0 %v416
    %629 = vmatprep.subr.mxu0 %v422
    %630 = vmatpush1.msra.mxu0 %v421
    %631 = vmatprep.subr.mxu0 %v427
    %632 = vmatpush1.msra.mxu0 %v426
    %633 = vmatprep.subr.mxu0 %v432
    %634 = vmatpush1.msra.mxu0 %v431
    %635 = vmatprep.subr.mxu0 %v437
    %636 = vmatpush1.msra.mxu0 %v436
    %637 = vmatprep.subr.mxu0 %v442
    %638 = vmatpush1.msra.mxu0 %v441
    %639 = vmatprep.subr.mxu0 %v447
    %640 = vmatpush1.msra.mxu0 %v446
    %641 = vmatprep.subr.mxu0 %v452
    %642 = vmatpush1.msra.mxu0 %v451
    %643 = vmatprep.subr.mxu0 %v457
    %644 = vmatpush1.msra.mxu0 %v456
    %645 = vmatprep.subr.mxu0 %v462
    %646 = vmatpush1.msra.mxu0 %v461
    %647 = vmatprep.subr.mxu0 %v467
    %648 = vmatpush1.msra.mxu0 %v466
    %649 = vmatprep.subr.mxu0 %v472
    %650 = vmatpush1.msra.mxu0 %v471
    %651 = vmatprep.subr.mxu0 %v477
    %652 = vmatpush1.msra.mxu0 %v476
    %653 = vmatprep.subr.mxu0 %v482
    %654 = vmatpush1.msra.mxu0 %v481
    %655 = vmatprep.subr.mxu0 %v487
    %656 = vmatpush1.msra.mxu0 %v486
    %657 = vmatprep.subr.mxu0 %v492
    %658 = vmatpush1.msra.mxu0 %v491
    %659 = vmatprep.subr.mxu0 %v497
    %660 = vmatpush1.msra.mxu0 %v496
    %661 = vmatprep.subr.mxu0 %v502
    %662 = vmatpush1.msra.mxu0 %v501
    %663 = vmatprep.subr.mxu0 %v507
    %664 = vmatpush1.msra.mxu0 %v506
    %665 = vmatprep.subr.mxu0 %v512
    %666 = vmatpush1.msra.mxu0 %v511
    %667 = vmatprep.subr.mxu0 0.0
    %668 = vmatpush1.msra.mxu0 0.0
    %669 = vmatprep.subr.mxu0 0.0
    %670 = vmatpush1.msra.mxu0 0.0
    %671 = vmatprep.subr.mxu0 0.0
    %672 = vmatpush1.msra.mxu0 0.0
    %673 = vmatprep.subr.mxu0 0.0
    %674 = vmatpush1.msra.mxu0 0.0
    %675 = vmatprep.subr.mxu0 0.0
    %676 = vmatpush1.msra.mxu0 0.0
    %677 = vmatprep.subr.mxu0 0.0
    %678 = vmatpush1.msra.mxu0 0.0
    %679 = vmatprep.subr.mxu0 0.0
    %680 = vmatpush1.msra.mxu0 0.0
    %681 = vmatprep.mubr.f32.mxu0 %v544
    %682 = vmatmul.mubr.f32.gmra.mrb[0].mxu0 %v114
    %v683 = vpop.f32.mrb[0].mxu0
    %v684 = vadd.f32 %v527, %v683
    %v685 = vpop.f32.mrb[0].mxu0
    %v686 = vadd.f32 %v531, %v685
    %687 = vdwg.mxu0
    %688 = vmatprep.subr.mxu0 0.0
    %689 = vmatpush1.msra.mxu0 %v393
    %690 = vmatprep.subr.mxu0 0.0
    %691 = vmatpush1.msra.mxu0 %v398
    %692 = vmatprep.subr.mxu0 0.0
    %693 = vmatpush1.msra.mxu0 %v403
    %694 = vmatprep.subr.mxu0 0.0
    %695 = vmatpush1.msra.mxu0 %v408
    %696 = vmatprep.subr.mxu0 0.0
    %697 = vmatpush1.msra.mxu0 %v413
    %698 = vmatprep.subr.mxu0 0.0
    %699 = vmatpush1.msra.mxu0 %v418
    %700 = vmatprep.subr.mxu0 0.0
    %701 = vmatpush1.msra.mxu0 %v423
    %702 = vmatprep.subr.mxu0 0.0
    %703 = vmatpush1.msra.mxu0 %v428
    %704 = vmatprep.subr.mxu0 0.0
    %705 = vmatpush1.msra.mxu0 %v433
    %706 = vmatprep.subr.mxu0 0.0
    %707 = vmatpush1.msra.mxu0 %v438
    %708 = vmatprep.subr.mxu0 0.0
    %709 = vmatpush1.msra.mxu0 %v443
    %710 = vmatprep.subr.mxu0 0.0
    %711 = vmatpush1.msra.mxu0 %v448
    %712 = vmatprep.subr.mxu0 0.0
    %713 = vmatpush1.msra.mxu0 %v453
    %714 = vmatprep.subr.mxu0 0.0
    %715 = vmatpush1.msra.mxu0 %v458
    %716 = vmatprep.subr.mxu0 0.0
    %717 = vmatpush1.msra.mxu0 %v463
    %718 = vmatprep.subr.mxu0 0.0
    %719 = vmatpush1.msra.mxu0 %v468
    %720 = vmatprep.subr.mxu0 0.0
    %721 = vmatpush1.msra.mxu0 %v473
    %722 = vmatprep.subr.mxu0 0.0
    %723 = vmatpush1.msra.mxu0 %v478
    %724 = vmatprep.subr.mxu0 0.0
    %725 = vmatpush1.msra.mxu0 %v483
    %726 = vmatprep.subr.mxu0 0.0
    %727 = vmatpush1.msra.mxu0 %v488
    %728 = vmatprep.subr.mxu0 0.0
    %729 = vmatpush1.msra.mxu0 %v493
    %730 = vmatprep.subr.mxu0 0.0
    %731 = vmatpush1.msra.mxu0 %v498
    %732 = vmatprep.subr.mxu0 0.0
    %733 = vmatpush1.msra.mxu0 %v503
    %734 = vmatprep.subr.mxu0 0.0
    %735 = vmatpush1.msra.mxu0 %v508
    %736 = vmatprep.subr.mxu0 0.0
    %737 = vmatpush1.msra.mxu0 %v513
    %738 = vmatprep.subr.mxu0 0.0
    %739 = vmatpush1.msra.mxu0 0.0
    %740 = vmatprep.subr.mxu0 0.0
    %741 = vmatpush1.msra.mxu0 0.0
    %742 = vmatprep.subr.mxu0 0.0
    %743 = vmatpush1.msra.mxu0 0.0
    %744 = vmatprep.subr.mxu0 0.0
    %745 = vmatpush1.msra.mxu0 0.0
    %746 = vmatprep.subr.mxu0 0.0
    %747 = vmatpush1.msra.mxu0 0.0
    %748 = vmatprep.subr.mxu0 0.0
    %749 = vmatpush1.msra.mxu0 0.0
    %750 = vmatprep.subr.mxu0 0.0
    %751 = vmatpush1.msra.mxu0 0.0
    %752 = vmatprep.mubr.f32.mxu0 %v544
    %753 = vmatmul.mubr.f32.gmra.mrb[0].mxu0 %v114
    %v754 = vpop.f32.mrb[0].mxu0
    %v755 = vadd.f32 %v535, %v754
    %v756 = vpop.f32.mrb[0].mxu0
    %757 = vdwg.mxu0
    %v758 = vld [vmem:[%s6] sm:$0x1f]
    %v759 = vld [vmem:[%s7] sm:$0x1f]
    %vm760 = vcmask 1042432
    %v761 = vsel %vm760, %v244, 0.0
    %v762 = vrot.slane %v761, 4
    %v763 = vadd.f32 %v761, %v762
    %v764 = vrot.slane %v763, 2
    %v765 = vadd.f32 %v763, %v764
    %v766 = vrot.slane %v765, 1
    %v767 = vadd.f32 %v765, %v766
    %v768 = vsel %vm760, %v246, 0.0
    %v769 = vrot.slane %v768, 4
    %v770 = vadd.f32 %v768, %v769
    %v771 = vrot.slane %v770, 2
    %v772 = vadd.f32 %v770, %v771
    %v773 = vrot.slane %v772, 1
    %v774 = vadd.f32 %v772, %v773
    %v775 = vsel %vm760, %v315, 0.0
    %v776 = vrot.slane %v775, 4
    %v777 = vadd.f32 %v775, %v776
    %v778 = vrot.slane %v777, 2
    %v779 = vadd.f32 %v777, %v778
    %v780 = vrot.slane %v779, 1
    %v781 = vadd.f32 %v779, %v780
    %v782 = vsel %vm760, %v317, 0.0
    %v783 = vrot.slane %v782, 4
    %v784 = vadd.f32 %v782, %v783
    %v785 = vrot.slane %v784, 2
    %v786 = vadd.f32 %v784, %v785
    %v787 = vrot.slane %v786, 1
    %v788 = vadd.f32 %v786, %v787
    %vm789 = vcmask 714752
    %v790 = vsel %vm789, %v386, 0.0
    %v791 = vrot.slane %v790, 4
    %v792 = vadd.f32 %v790, %v791
    %v793 = vrot.slane %v792, 2
    %v794 = vadd.f32 %v792, %v793
    %v795 = vrot.slane %v794, 1
    %v796 = vadd.f32 %v794, %v795
    %v797 = vmul.f32 %v767, 0.33333334
    %v798 = vmul.f32 %v774, 0.33333334
    %v799 = vmul.f32 %v781, 0.33333334
    %v800 = vmul.f32 %v788, 0.33333334
    %v801 = vmul.f32 %v796, 0.33333334
    %v802 = vsub.f32 %v244, %v797
    %v803 = vsub.f32 %v246, %v798
    %v804 = vsub.f32 %v315, %v799
    %v805 = vsub.f32 %v317, %v800
    %v806 = vsub.f32 %v386, %v801
    %v807 = vmul.f32 %v802, %v802
    %v808 = vmul.f32 %v803, %v803
    %v809 = vmul.f32 %v804, %v804
    %v810 = vmul.f32 %v805, %v805
    %v811 = vmul.f32 %v806, %v806
    %v812 = vsel %vm760, %v807, 0.0
    %v813 = vrot.slane %v812, 4
    %v814 = vadd.f32 %v812, %v813
    %v815 = vrot.slane %v814, 2
    %v816 = vadd.f32 %v814, %v815
    %v817 = vrot.slane %v816, 1
    %v818 = vadd.f32 %v816, %v817
    %v819 = vsel %vm760, %v808, 0.0
    %v820 = vrot.slane %v819, 4
    %v821 = vadd.f32 %v819, %v820
    %v822 = vrot.slane %v821, 2
    %v823 = vadd.f32 %v821, %v822
    %v824 = vrot.slane %v823, 1
    %v825 = vadd.f32 %v823, %v824
    %v826 = vsel %vm760, %v809, 0.0
    %v827 = vrot.slane %v826, 4
    %v828 = vadd.f32 %v826, %v827
    %v829 = vrot.slane %v828, 2
    %v830 = vadd.f32 %v828, %v829
    %v831 = vrot.slane %v830, 1
    %v832 = vadd.f32 %v830, %v831
    %v833 = vsel %vm760, %v810, 0.0
    %v834 = vrot.slane %v833, 4
    %v835 = vadd.f32 %v833, %v834
    %v836 = vrot.slane %v835, 2
    %v837 = vadd.f32 %v835, %v836
    %v838 = vrot.slane %v837, 1
    %v839 = vadd.f32 %v837, %v838
    %v840 = vsel %vm789, %v811, 0.0
    %v841 = vrot.slane %v840, 4
    %v842 = vadd.f32 %v840, %v841
    %v843 = vrot.slane %v842, 2
    %v844 = vadd.f32 %v842, %v843
    %v845 = vrot.slane %v844, 1
    %v846 = vadd.f32 %v844, %v845
    %v847 = vmul.f32 %v818, 0.33333334
    %v848 = vmul.f32 %v825, 0.33333334
    %v849 = vmul.f32 %v832, 0.33333334
    %v850 = vmul.f32 %v839, 0.33333334
    %v851 = vmul.f32 %v846, 0.33333334
    %v852 = vadd.f32 %v847, 1e-05
    %v853 = vadd.f32 %v848, 1e-05
    %v854 = vadd.f32 %v849, 1e-05
    %v855 = vadd.f32 %v850, 1e-05
    %v856 = vadd.f32 %v851, 1e-05
    %v857 = vrsqrt.pop %v852
    %v858 = vrsqrt.pop %v853
    %v859 = vrsqrt.pop %v854
    %v860 = vrsqrt.pop %v855
    %v861 = vrsqrt.pop %v856
    %v867 = vcombine.low %v857, %v858
    %v868 = vcombine.low %v859, %v860
    %v870 = vunpack.c.l.s4 1966171168
    %v871 = vunpack.c.0.s8 %v870
    %v872 = vlaneseq
    %v873 = vshrl.u32 %v872, 7
    %v874 = vsub.s32 %v871, %v873
    %v875 = vrot.slane %v867, %v874
    %v877 = vunpack.c.l.s4 1966171168
    %v878 = vunpack.c.0.s8 %v877
    %v879 = vlaneseq
    %v880 = vshrl.u32 %v879, 7
    %v881 = vsub.s32 %v878, %v880
    %v882 = vrot.slane %v868, %v881
    %v884 = vunpack.c.l.s4 1966171168
    %v885 = vunpack.c.0.s8 %v884
    %v886 = vlaneseq
    %v887 = vshrl.u32 %v886, 7
    %v888 = vsub.s32 %v885, %v887
    %v889 = vrot.slane %v861, %v888
    %v890 = vcombine.low %v875, %v882
    %v892 = vunpack.c.l.s4 1966171168
    %v893 = vunpack.c.0.s8 %v892
    %v894 = vlaneseq
    %v895 = vshrl.u32 %v894, 7
    %v896 = vsub.s32 %v893, %v895
    %v897 = vrot.slane %v890, %v896
    %v899 = vunpack.c.l.s4 1966171168
    %v900 = vunpack.c.0.s8 %v899
    %v901 = vlaneseq
    %v902 = vshrl.u32 %v901, 7
    %v903 = vsub.s32 %v900, %v902
    %v904 = vrot.slane %v889, %v903
    %v905 = vcombine.low %v897, %v904
    %v907 = vmul.f32 %v758, %v905
    %v909 = vlaneseq
    %v910 = vshrl.u32 %v909, 7
    %v911 = vsub.s32 0, %v910
    %v912 = vrot.slane %v907, %v911
    %v913 = vlaneseq
    %v914 = vshrl.u32 %v913, 7
    %v915 = vsub.s32 1, %v914
    %v916 = vrot.slane %v907, %v915
    %v917 = vlaneseq
    %v918 = vshrl.u32 %v917, 7
    %v919 = vsub.s32 2, %v918
    %v920 = vrot.slane %v907, %v919
    %v921 = vlaneseq
    %v922 = vshrl.u32 %v921, 7
    %v923 = vsub.s32 3, %v922
    %v924 = vrot.slane %v907, %v923
    %v925 = vlaneseq
    %v926 = vshrl.u32 %v925, 7
    %v927 = vsub.s32 4, %v926
    %v928 = vrot.slane %v907, %v927
    %v934 = vmul.f32 %v802, %v912
    %v935 = vmul.f32 %v803, %v916
    %v936 = vmul.f32 %v804, %v920
    %v937 = vmul.f32 %v805, %v924
    %v938 = vmul.f32 %v806, %v928
    %v940 = vlaneseq
    %v941 = vshrl.u32 %v940, 7
    %v942 = vsub.s32 0, %v941
    %v943 = vrot.slane %v759, %v942
    %v944 = vlaneseq
    %v945 = vshrl.u32 %v944, 7
    %v946 = vsub.s32 1, %v945
    %v947 = vrot.slane %v759, %v946
    %v948 = vlaneseq
    %v949 = vshrl.u32 %v948, 7
    %v950 = vsub.s32 2, %v949
    %v951 = vrot.slane %v759, %v950
    %v952 = vlaneseq
    %v953 = vshrl.u32 %v952, 7
    %v954 = vsub.s32 3, %v953
    %v955 = vrot.slane %v759, %v954
    %v956 = vlaneseq
    %v957 = vshrl.u32 %v956, 7
    %v958 = vsub.s32 4, %v957
    %v959 = vrot.slane %v759, %v958
    %v965 = vadd.f32 %v934, %v943
    %v966 = vadd.f32 %v935, %v947
    %v967 = vadd.f32 %v936, %v951
    %v968 = vadd.f32 %v937, %v955
    %v969 = vadd.f32 %v938, %v959
    %v970 = vsel %vm760, %v613, 0.0
    %v971 = vrot.slane %v970, 4
    %v972 = vadd.f32 %v970, %v971
    %v973 = vrot.slane %v972, 2
    %v974 = vadd.f32 %v972, %v973
    %v975 = vrot.slane %v974, 1
    %v976 = vadd.f32 %v974, %v975
    %v977 = vsel %vm760, %v615, 0.0
    %v978 = vrot.slane %v977, 4
    %v979 = vadd.f32 %v977, %v978
    %v980 = vrot.slane %v979, 2
    %v981 = vadd.f32 %v979, %v980
    %v982 = vrot.slane %v981, 1
    %v983 = vadd.f32 %v981, %v982
    %v984 = vsel %vm760, %v684, 0.0
    %v985 = vrot.slane %v984, 4
    %v986 = vadd.f32 %v984, %v985
    %v987 = vrot.slane %v986, 2
    %v988 = vadd.f32 %v986, %v987
    %v989 = vrot.slane %v988, 1
    %v990 = vadd.f32 %v988, %v989
    %v991 = vsel %vm760, %v686, 0.0
    %v992 = vrot.slane %v991, 4
    %v993 = vadd.f32 %v991, %v992
    %v994 = vrot.slane %v993, 2
    %v995 = vadd.f32 %v993, %v994
    %v996 = vrot.slane %v995, 1
    %v997 = vadd.f32 %v995, %v996
    %v998 = vsel %vm789, %v755, 0.0
    %v999 = vrot.slane %v998, 4
    %v1000 = vadd.f32 %v998, %v999
    %v1001 = vrot.slane %v1000, 2
    %v1002 = vadd.f32 %v1000, %v1001
    %v1003 = vrot.slane %v1002, 1
    %v1004 = vadd.f32 %v1002, %v1003
    %v1005 = vmul.f32 %v976, 0.33333334
    %v1006 = vmul.f32 %v983, 0.33333334
    %v1007 = vmul.f32 %v990, 0.33333334
    %v1008 = vmul.f32 %v997, 0.33333334
    %v1009 = vmul.f32 %v1004, 0.33333334
    %v1010 = vsub.f32 %v613, %v1005
    %v1011 = vsub.f32 %v615, %v1006
    %v1012 = vsub.f32 %v684, %v1007
    %v1013 = vsub.f32 %v686, %v1008
    %v1014 = vsub.f32 %v755, %v1009
    %v1015 = vmul.f32 %v1010, %v1010
    %v1016 = vmul.f32 %v1011, %v1011
    %v1017 = vmul.f32 %v1012, %v1012
    %v1018 = vmul.f32 %v1013, %v1013
    %v1019 = vmul.f32 %v1014, %v1014
    %v1020 = vsel %vm760, %v1015, 0.0
    %v1021 = vrot.slane %v1020, 4
    %v1022 = vadd.f32 %v1020, %v1021
    %v1023 = vrot.slane %v1022, 2
    %v1024 = vadd.f32 %v1022, %v1023
    %v1025 = vrot.slane %v1024, 1
    %v1026 = vadd.f32 %v1024, %v1025
    %v1027 = vsel %vm760, %v1016, 0.0
    %v1028 = vrot.slane %v1027, 4
    %v1029 = vadd.f32 %v1027, %v1028
    %v1030 = vrot.slane %v1029, 2
    %v1031 = vadd.f32 %v1029, %v1030
    %v1032 = vrot.slane %v1031, 1
    %v1033 = vadd.f32 %v1031, %v1032
    %v1034 = vsel %vm760, %v1017, 0.0
    %v1035 = vrot.slane %v1034, 4
    %v1036 = vadd.f32 %v1034, %v1035
    %v1037 = vrot.slane %v1036, 2
    %v1038 = vadd.f32 %v1036, %v1037
    %v1039 = vrot.slane %v1038, 1
    %v1040 = vadd.f32 %v1038, %v1039
    %v1041 = vsel %vm760, %v1018, 0.0
    %v1042 = vrot.slane %v1041, 4
    %v1043 = vadd.f32 %v1041, %v1042
    %v1044 = vrot.slane %v1043, 2
    %v1045 = vadd.f32 %v1043, %v1044
    %v1046 = vrot.slane %v1045, 1
    %v1047 = vadd.f32 %v1045, %v1046
    %v1048 = vsel %vm789, %v1019, 0.0
    %v1049 = vrot.slane %v1048, 4
    %v1050 = vadd.f32 %v1048, %v1049
    %v1051 = vrot.slane %v1050, 2
    %v1052 = vadd.f32 %v1050, %v1051
    %v1053 = vrot.slane %v1052, 1
    %v1054 = vadd.f32 %v1052, %v1053
    %v1055 = vmul.f32 %v1026, 0.33333334
    %v1056 = vmul.f32 %v1033, 0.33333334
    %v1057 = vmul.f32 %v1040, 0.33333334
    %v1058 = vmul.f32 %v1047, 0.33333334
    %v1059 = vmul.f32 %v1054, 0.33333334
    %v1060 = vadd.f32 %v1055, 1e-05
    %v1061 = vadd.f32 %v1056, 1e-05
    %v1062 = vadd.f32 %v1057, 1e-05
    %v1063 = vadd.f32 %v1058, 1e-05
    %v1064 = vadd.f32 %v1059, 1e-05
    %v1065 = vrsqrt.pop %v1060
    %v1066 = vrsqrt.pop %v1061
    %v1067 = vrsqrt.pop %v1062
    %v1068 = vrsqrt.pop %v1063
    %v1069 = vrsqrt.pop %v1064
    %v1075 = vcombine.low %v1065, %v1066
    %v1076 = vcombine.low %v1067, %v1068
    %v1078 = vunpack.c.l.s4 1966171168
    %v1079 = vunpack.c.0.s8 %v1078
    %v1080 = vlaneseq
    %v1081 = vshrl.u32 %v1080, 7
    %v1082 = vsub.s32 %v1079, %v1081
    %v1083 = vrot.slane %v1075, %v1082
    %v1085 = vunpack.c.l.s4 1966171168
    %v1086 = vunpack.c.0.s8 %v1085
    %v1087 = vlaneseq
    %v1088 = vshrl.u32 %v1087, 7
    %v1089 = vsub.s32 %v1086, %v1088
    %v1090 = vrot.slane %v1076, %v1089
    %v1092 = vunpack.c.l.s4 1966171168
    %v1093 = vunpack.c.0.s8 %v1092
    %v1094 = vlaneseq
    %v1095 = vshrl.u32 %v1094, 7
    %v1096 = vsub.s32 %v1093, %v1095
    %v1097 = vrot.slane %v1069, %v1096
    %v1098 = vcombine.low %v1083, %v1090
    %v1100 = vunpack.c.l.s4 1966171168
    %v1101 = vunpack.c.0.s8 %v1100
    %v1102 = vlaneseq
    %v1103 = vshrl.u32 %v1102, 7
    %v1104 = vsub.s32 %v1101, %v1103
    %v1105 = vrot.slane %v1098, %v1104
    %v1107 = vunpack.c.l.s4 1966171168
    %v1108 = vunpack.c.0.s8 %v1107
    %v1109 = vlaneseq
    %v1110 = vshrl.u32 %v1109, 7
    %v1111 = vsub.s32 %v1108, %v1110
    %v1112 = vrot.slane %v1097, %v1111
    %v1113 = vcombine.low %v1105, %v1112
    %v1115 = vmul.f32 %v758, %v1113
    %v1117 = vlaneseq
    %v1118 = vshrl.u32 %v1117, 7
    %v1119 = vsub.s32 0, %v1118
    %v1120 = vrot.slane %v1115, %v1119
    %v1121 = vlaneseq
    %v1122 = vshrl.u32 %v1121, 7
    %v1123 = vsub.s32 1, %v1122
    %v1124 = vrot.slane %v1115, %v1123
    %v1125 = vlaneseq
    %v1126 = vshrl.u32 %v1125, 7
    %v1127 = vsub.s32 2, %v1126
    %v1128 = vrot.slane %v1115, %v1127
    %v1129 = vlaneseq
    %v1130 = vshrl.u32 %v1129, 7
    %v1131 = vsub.s32 3, %v1130
    %v1132 = vrot.slane %v1115, %v1131
    %v1133 = vlaneseq
    %v1134 = vshrl.u32 %v1133, 7
    %v1135 = vsub.s32 4, %v1134
    %v1136 = vrot.slane %v1115, %v1135
    %v1142 = vmul.f32 %v1010, %v1120
    %v1143 = vmul.f32 %v1011, %v1124
    %v1144 = vmul.f32 %v1012, %v1128
    %v1145 = vmul.f32 %v1013, %v1132
    %v1146 = vmul.f32 %v1014, %v1136
    %v1147 = vadd.f32 %v1142, %v943
    %v1148 = vadd.f32 %v1143, %v947
    %v1149 = vadd.f32 %v1144, %v951
    %v1150 = vadd.f32 %v1145, %v955
    %v1151 = vadd.f32 %v1146, %v959
    %v1152 = vadd.f32 %v965, %v1147
    %v1153 = vadd.f32 %v966, %v1148
    %v1154 = vsub.f32 0.0, %v1152
    %v1155 = vsub.f32 0.0, %v1153
    %v1156 = vmul.f32 %v1154, 1.442695
    %v1157 = vpow.pop %v1156
    %v1158 = vmul.f32 %v1155, 1.442695
    %v1159 = vpow.pop %v1158
    %v1160 = vadd.f32 %v1157, 1.0
    %v1161 = vadd.f32 %v1159, 1.0
    %v1162 = vrcp.pop %v1160
    %v1163 = vmul.f32 1.0, %v1162
    %v1164 = vrcp.pop %v1161
    %v1165 = vmul.f32 1.0, %v1164
    %v1166 = vadd.f32 %v967, %v1149
    %v1167 = vadd.f32 %v968, %v1150
    %v1168 = vsub.f32 0.0, %v1166
    %v1169 = vsub.f32 0.0, %v1167
    %v1170 = vmul.f32 %v1168, 1.442695
    %v1171 = vpow.pop %v1170
    %v1172 = vmul.f32 %v1169, 1.442695
    %v1173 = vpow.pop %v1172
    %v1174 = vadd.f32 %v1171, 1.0
    %v1175 = vadd.f32 %v1173, 1.0
    %v1176 = vrcp.pop %v1174
    %v1177 = vmul.f32 1.0, %v1176
    %v1178 = vrcp.pop %v1175
    %v1179 = vmul.f32 1.0, %v1178
    %1182 = vrot.lane.b32.xlu0 %v1150, 56
    %v1183 = vpop.permute.xlu0 %1182
    %1184 = vrot.lane.b32.xlu0 %v1151, 56
    %v1185 = vpop.permute.xlu0 %1184
    %vm1186 = vcmask 457728
    %v1187 = vsel %vm1186, %v1183, %v1185
    %v1191 = vmul.f32 %v1165, %v1183
    %v1192 = vmul.f32 %v1177, %v1187
    %v1193 = vmul.f32 %v1179, %v1185
    %1197 = vrot.lane.b32.xlu0 %v1191, 72
    %v1198 = vpop.permute.xlu0 %1197
    %1199 = vrot.lane.b32.xlu0 %v1192, 72
    %v1200 = vpop.permute.xlu0 %1199
    %1201 = vrot.lane.b32.xlu0 %v1193, 72
    %v1202 = vpop.permute.xlu0 %1201
    %v1203 = vsel %vm543, %v1198, %v1200
    %v1204 = vsel %vm543, %v1200, %v1202
    %v1207 = vadd.f32 %v968, %v1203
    %v1208 = vadd.f32 %v969, %v1204
    %v1209 = vtanh.pop %v1207
    %v1210 = vtanh.pop %v1208
    %v1211 = vsub.f32 1.0, %v1163
    %v1212 = vsub.f32 1.0, %v1165
    %v1214 = vmul.f32 %v1211, %v114
    %v1215 = vmul.f32 %v1212, %v542
    %1218 = vrot.lane.b32.xlu0 %v1209, 112
    %v1219 = vpop.permute.xlu0 %1218
    %1220 = vrot.lane.b32.xlu0 %v1210, 112
    %v1221 = vpop.permute.xlu0 %1220
    %vm1222 = vcmask 916480
    %v1223 = vsel %vm1222, %v1219, %v1221
    %v1226 = vmul.f32 %v1163, %v1223
    %v1227 = vmul.f32 %v1165, %v1221
    %v1228 = vadd.f32 %v1214, %v1226
    %v1229 = vadd.f32 %v1215, %v1227
    %v1232 = vcombine.low %v1228, %v1229
    %vm1234 = vcmask 587780
    %vm1235 = vmor %vm1234, %vm760
    %1236 = vst.msk [vmem:[%s14] sm:$0x77] %vm1235, %v1232
    %s1237 = scalar_lea.vmem %s1, 8
    %v1238 = vld [vmem:[%s1237] sm:$0x77]
    %v1239 = vld [vmem:[#allocation7] sm:$0xff]
    %v1240 = vld [vmem:[#allocation7 + $0x8] sm:$0xff]
    %v1241 = vld [vmem:[#allocation7 + $0x10] sm:$0xff]
    %v1242 = vld [vmem:[#allocation7 + $0x18] sm:$0xff]
    %v1243 = vld [vmem:[#allocation7 + $0x20] sm:$0xff]
    %v1244 = vld [vmem:[#allocation7 + $0x28] sm:$0xff]
    %v1245 = vld [vmem:[#allocation7 + $0x30] sm:$0xff]
    %v1246 = vld [vmem:[#allocation7 + $0x38] sm:$0xff]
    %v1247 = vld [vmem:[#allocation7 + $0x40] sm:$0xff]
    %v1248 = vld [vmem:[#allocation7 + $0x48] sm:$0xff]
    %v1249 = vld [vmem:[#allocation7 + $0x50] sm:$0xff]
    %v1250 = vld [vmem:[#allocation7 + $0x58] sm:$0xff]
    %v1251 = vld [vmem:[#allocation7 + $0x60] sm:$0xff]
    %v1252 = vld [vmem:[#allocation7 + $0x68] sm:$0xff]
    %v1253 = vld [vmem:[#allocation7 + $0x70] sm:$0xff]
    %v1254 = vld [vmem:[#allocation7 + $0x78] sm:$0xff]
    %v1255 = vld [vmem:[#allocation7 + $0x80] sm:$0xff]
    %v1256 = vld [vmem:[#allocation7 + $0x88] sm:$0xff]
    %v1257 = vld [vmem:[#allocation7 + $0x90] sm:$0xff]
    %v1258 = vld [vmem:[#allocation7 + $0x98] sm:$0xff]
    %v1259 = vld [vmem:[#allocation7 + $0xa0] sm:$0xff]
    %v1260 = vld [vmem:[#allocation7 + $0xa8] sm:$0xff]
    %v1261 = vld [vmem:[#allocation7 + $0xb0] sm:$0xff]
    %v1262 = vld [vmem:[#allocation7 + $0xb8] sm:$0xff]
    %v1263 = vld [vmem:[#allocation7 + $0xc0] sm:$0xff]
    %v1264 = vld [vmem:[#allocation7 + $0xc8] sm:$0xff]
    %v1265 = vld [vmem:[#allocation7 + $0xd0] sm:$0xff]
    %v1266 = vld [vmem:[#allocation7 + $0xd8] sm:$0xff]
    %v1267 = vld [vmem:[#allocation7 + $0xe0] sm:$0xff]
    %v1268 = vld [vmem:[#allocation7 + $0xe8] sm:$0xff]
    %v1269 = vld [vmem:[#allocation7 + $0xf0] sm:$0xff]
    %v1270 = vld [vmem:[#allocation7 + $0xf8] sm:$0xff]
    %v1271 = vld [vmem:[#allocation7 + $0x100] sm:$0xff]
    %v1272 = vld [vmem:[#allocation7 + $0x108] sm:$0xff]
    %v1273 = vld [vmem:[#allocation7 + $0x110] sm:$0xff]
    %v1274 = vld [vmem:[#allocation7 + $0x118] sm:$0xff]
    %v1275 = vld [vmem:[#allocation7 + $0x120] sm:$0xff]
    %v1276 = vld [vmem:[#allocation7 + $0x128] sm:$0xff]
    %v1277 = vld [vmem:[#allocation7 + $0x130] sm:$0xff]
    %v1278 = vld [vmem:[#allocation7 + $0x138] sm:$0xff]
    %v1279 = vld [vmem:[#allocation7 + $0x140] sm:$0xff]
    %v1280 = vld [vmem:[#allocation7 + $0x148] sm:$0xff]
    %v1281 = vld [vmem:[#allocation7 + $0x150] sm:$0xff]
    %v1282 = vld [vmem:[#allocation7 + $0x158] sm:$0xff]
    %v1283 = vld [vmem:[#allocation7 + $0x160] sm:$0xff]
    %v1284 = vld [vmem:[#allocation7 + $0x168] sm:$0xff]
    %v1285 = vld [vmem:[#allocation7 + $0x170] sm:$0xff]
    %v1286 = vld [vmem:[#allocation7 + $0x178] sm:$0xff]
    %v1287 = vld [vmem:[#allocation7 + $0x180] sm:$0xff]
    %v1288 = vld [vmem:[#allocation7 + $0x188] sm:$0xff]
    %v1289 = vld [vmem:[#allocation7 + $0x190] sm:$0xff]
    %v1290 = vld [vmem:[#allocation7 + $0x198] sm:$0xff]
    %v1291 = vld [vmem:[#allocation7 + $0x1a0] sm:$0xff]
    %v1292 = vld [vmem:[#allocation7 + $0x1a8] sm:$0xff]
    %v1293 = vld [vmem:[#allocation7 + $0x1b0] sm:$0xff]
    %v1294 = vld [vmem:[#allocation7 + $0x1b8] sm:$0xff]
    %v1295 = vld [vmem:[#allocation7 + $0x1c0] sm:$0xff]
    %v1296 = vld [vmem:[#allocation7 + $0x1c8] sm:$0xff]
    %v1297 = vld [vmem:[#allocation7 + $0x1d0] sm:$0xff]
    %v1298 = vld [vmem:[#allocation7 + $0x1d8] sm:$0xff]
    %v1299 = vld [vmem:[#allocation7 + $0x1e0] sm:$0xff]
    %v1300 = vld [vmem:[#allocation7 + $0x1e8] sm:$0xff]
    %v1301 = vld [vmem:[#allocation7 + $0x1f0] sm:$0xff]
    %v1302 = vld [vmem:[#allocation7 + $0x1f8] sm:$0xff]
    %v1303 = vld [vmem:[#allocation7 + $0x200] sm:$0xff]
    %v1304 = vld [vmem:[#allocation7 + $0x208] sm:$0xff]
    %v1305 = vld [vmem:[#allocation7 + $0x210] sm:$0xff]
    %v1306 = vld [vmem:[#allocation7 + $0x218] sm:$0xff]
    %v1307 = vld [vmem:[#allocation7 + $0x220] sm:$0xff]
    %v1308 = vld [vmem:[#allocation7 + $0x228] sm:$0xff]
    %v1309 = vld [vmem:[#allocation7 + $0x230] sm:$0xff]
    %v1310 = vld [vmem:[#allocation7 + $0x238] sm:$0xff]
    %v1311 = vld [vmem:[#allocation7 + $0x240] sm:$0xff]
    %v1312 = vld [vmem:[#allocation7 + $0x248] sm:$0xff]
    %v1313 = vld [vmem:[#allocation7 + $0x250] sm:$0xff]
    %v1314 = vld [vmem:[#allocation7 + $0x258] sm:$0xff]
    %v1315 = vld [vmem:[#allocation7 + $0x260] sm:$0xff]
    %v1316 = vld [vmem:[#allocation7 + $0x268] sm:$0xff]
    %v1317 = vld [vmem:[#allocation7 + $0x270] sm:$0xff]
    %v1318 = vld [vmem:[#allocation7 + $0x278] sm:$0xff]
    %v1319 = vld [vmem:[#allocation7 + $0x280] sm:$0xff]
    %v1320 = vld [vmem:[#allocation7 + $0x288] sm:$0xff]
    %v1321 = vld [vmem:[#allocation7 + $0x290] sm:$0xff]
    %v1322 = vld [vmem:[#allocation7 + $0x298] sm:$0xff]
    %v1323 = vld [vmem:[#allocation7 + $0x2a0] sm:$0xff]
    %v1324 = vld [vmem:[#allocation7 + $0x2a8] sm:$0xff]
    %v1325 = vld [vmem:[#allocation7 + $0x2b0] sm:$0xff]
    %v1326 = vld [vmem:[#allocation7 + $0x2b8] sm:$0xff]
    %v1327 = vld [vmem:[#allocation7 + $0x2c0] sm:$0xff]
    %v1328 = vld [vmem:[#allocation7 + $0x2c8] sm:$0xff]
    %v1329 = vld [vmem:[#allocation7 + $0x2d0] sm:$0xff]
    %v1330 = vld [vmem:[#allocation7 + $0x2d8] sm:$0xff]
    %v1331 = vld [vmem:[#allocation7 + $0x2e0] sm:$0xff]
    %v1332 = vld [vmem:[#allocation7 + $0x2e8] sm:$0xff]
    %v1333 = vld [vmem:[#allocation7 + $0x2f0] sm:$0xff]
    %v1334 = vld [vmem:[#allocation7 + $0x2f8] sm:$0xff]
    %v1335 = vld [vmem:[#allocation7 + $0x300] sm:$0xff]
    %v1336 = vld [vmem:[#allocation7 + $0x308] sm:$0xff]
    %v1337 = vld [vmem:[#allocation7 + $0x310] sm:$0xff]
    %v1338 = vld [vmem:[#allocation7 + $0x318] sm:$0xff]
    %v1339 = vld [vmem:[#allocation7 + $0x320] sm:$0xff]
    %v1340 = vld [vmem:[#allocation7 + $0x328] sm:$0xff]
    %v1341 = vld [vmem:[#allocation7 + $0x330] sm:$0xff]
    %v1342 = vld [vmem:[#allocation7 + $0x338] sm:$0xff]
    %v1343 = vld [vmem:[#allocation7 + $0x340] sm:$0xff]
    %v1344 = vld [vmem:[#allocation7 + $0x348] sm:$0xff]
    %v1345 = vld [vmem:[#allocation7 + $0x350] sm:$0xff]
    %v1346 = vld [vmem:[#allocation7 + $0x358] sm:$0xff]
    %v1347 = vld [vmem:[#allocation7 + $0x360] sm:$0xff]
    %v1348 = vld [vmem:[#allocation7 + $0x368] sm:$0xff]
    %v1349 = vld [vmem:[#allocation7 + $0x370] sm:$0xff]
    %v1350 = vld [vmem:[#allocation7 + $0x378] sm:$0xff]
    %v1351 = vld [vmem:[#allocation7 + $0x380] sm:$0xff]
    %v1352 = vld [vmem:[#allocation7 + $0x388] sm:$0xff]
    %v1353 = vld [vmem:[#allocation7 + $0x390] sm:$0xff]
    %v1354 = vld [vmem:[#allocation7 + $0x398] sm:$0xff]
    %v1355 = vld [vmem:[#allocation7 + $0x3a0] sm:$0xff]
    %v1356 = vld [vmem:[#allocation7 + $0x3a8] sm:$0xff]
    %v1357 = vld [vmem:[#allocation7 + $0x3b0] sm:$0xff]
    %v1358 = vld [vmem:[#allocation7 + $0x3b8] sm:$0xff]
    %v1359 = vld [vmem:[#allocation7 + $0x3c0] sm:$0xff]
    %v1360 = vld [vmem:[#allocation7 + $0x3c8] sm:$0xff]
    %v1361 = vld [vmem:[#allocation7 + $0x3d0] sm:$0xff]
    %v1362 = vld [vmem:[#allocation7 + $0x3d8] sm:$0xff]
    %v1363 = vld [vmem:[#allocation7 + $0x3e0] sm:$0xff]
    %v1364 = vld [vmem:[%s9] sm:$0x1f]
    %v1366 = vlaneseq
    %v1367 = vshrl.u32 %v1366, 7
    %v1368 = vsub.s32 0, %v1367
    %v1369 = vrot.slane %v1364, %v1368
    %v1370 = vlaneseq
    %v1371 = vshrl.u32 %v1370, 7
    %v1372 = vsub.s32 1, %v1371
    %v1373 = vrot.slane %v1364, %v1372
    %v1374 = vlaneseq
    %v1375 = vshrl.u32 %v1374, 7
    %v1376 = vsub.s32 2, %v1375
    %v1377 = vrot.slane %v1364, %v1376
    %v1378 = vlaneseq
    %v1379 = vshrl.u32 %v1378, 7
    %v1380 = vsub.s32 3, %v1379
    %v1381 = vrot.slane %v1364, %v1380
    %v1382 = vlaneseq
    %v1383 = vshrl.u32 %v1382, 7
    %v1384 = vsub.s32 4, %v1383
    %v1385 = vrot.slane %v1364, %v1384
    %v1391 = vsel %vm543, %v1229, 0
    %1393 = vmatprep.subr.mxu0 %v1240
    %1394 = vmatpush1.msra.mxu0 %v1239
    %1395 = vmatprep.subr.mxu0 %v1245
    %1396 = vmatpush1.msra.mxu0 %v1244
    %1397 = vmatprep.subr.mxu0 %v1250
    %1398 = vmatpush1.msra.mxu0 %v1249
    %1399 = vmatprep.subr.mxu0 %v1255
    %1400 = vmatpush1.msra.mxu0 %v1254
    %1401 = vmatprep.subr.mxu0 %v1260
    %1402 = vmatpush1.msra.mxu0 %v1259
    %1403 = vmatprep.subr.mxu0 %v1265
    %1404 = vmatpush1.msra.mxu0 %v1264
    %1405 = vmatprep.subr.mxu0 %v1270
    %1406 = vmatpush1.msra.mxu0 %v1269
    %1407 = vmatprep.subr.mxu0 %v1275
    %1408 = vmatpush1.msra.mxu0 %v1274
    %1409 = vmatprep.subr.mxu0 %v1280
    %1410 = vmatpush1.msra.mxu0 %v1279
    %1411 = vmatprep.subr.mxu0 %v1285
    %1412 = vmatpush1.msra.mxu0 %v1284
    %1413 = vmatprep.subr.mxu0 %v1290
    %1414 = vmatpush1.msra.mxu0 %v1289
    %1415 = vmatprep.subr.mxu0 %v1295
    %1416 = vmatpush1.msra.mxu0 %v1294
    %1417 = vmatprep.subr.mxu0 %v1300
    %1418 = vmatpush1.msra.mxu0 %v1299
    %1419 = vmatprep.subr.mxu0 %v1305
    %1420 = vmatpush1.msra.mxu0 %v1304
    %1421 = vmatprep.subr.mxu0 %v1310
    %1422 = vmatpush1.msra.mxu0 %v1309
    %1423 = vmatprep.subr.mxu0 %v1315
    %1424 = vmatpush1.msra.mxu0 %v1314
    %1425 = vmatprep.subr.mxu0 %v1320
    %1426 = vmatpush1.msra.mxu0 %v1319
    %1427 = vmatprep.subr.mxu0 %v1325
    %1428 = vmatpush1.msra.mxu0 %v1324
    %1429 = vmatprep.subr.mxu0 %v1330
    %1430 = vmatpush1.msra.mxu0 %v1329
    %1431 = vmatprep.subr.mxu0 %v1335
    %1432 = vmatpush1.msra.mxu0 %v1334
    %1433 = vmatprep.subr.mxu0 %v1340
    %1434 = vmatpush1.msra.mxu0 %v1339
    %1435 = vmatprep.subr.mxu0 %v1345
    %1436 = vmatpush1.msra.mxu0 %v1344
    %1437 = vmatprep.subr.mxu0 %v1350
    %1438 = vmatpush1.msra.mxu0 %v1349
    %1439 = vmatprep.subr.mxu0 %v1355
    %1440 = vmatpush1.msra.mxu0 %v1354
    %1441 = vmatprep.subr.mxu0 %v1360
    %1442 = vmatpush1.msra.mxu0 %v1359
    %1443 = vmatprep.subr.mxu0 0.0
    %1444 = vmatpush1.msra.mxu0 0.0
    %1445 = vmatprep.subr.mxu0 0.0
    %1446 = vmatpush1.msra.mxu0 0.0
    %1447 = vmatprep.subr.mxu0 0.0
    %1448 = vmatpush1.msra.mxu0 0.0
    %1449 = vmatprep.subr.mxu0 0.0
    %1450 = vmatpush1.msra.mxu0 0.0
    %1451 = vmatprep.subr.mxu0 0.0
    %1452 = vmatpush1.msra.mxu0 0.0
    %1453 = vmatprep.subr.mxu0 0.0
    %1454 = vmatpush1.msra.mxu0 0.0
    %1455 = vmatprep.subr.mxu0 0.0
    %1456 = vmatpush1.msra.mxu0 0.0
    %1457 = vmatprep.mubr.f32.mxu0 %v1391
    %1458 = vmatmul.mubr.f32.gmra.mrb[0].mxu0 %v1228
    %v1459 = vpop.f32.mrb[0].mxu0
    %v1460 = vadd.f32 %v1369, %v1459
    %v1461 = vpop.f32.mrb[0].mxu0
    %v1462 = vadd.f32 %v1373, %v1461
    %1463 = vdwg.mxu0
    %1464 = vmatprep.subr.mxu0 %v1242
    %1465 = vmatpush1.msra.mxu0 %v1241
    %1466 = vmatprep.subr.mxu0 %v1247
    %1467 = vmatpush1.msra.mxu0 %v1246
    %1468 = vmatprep.subr.mxu0 %v1252
    %1469 = vmatpush1.msra.mxu0 %v1251
    %1470 = vmatprep.subr.mxu0 %v1257
    %1471 = vmatpush1.msra.mxu0 %v1256
    %1472 = vmatprep.subr.mxu0 %v1262
    %1473 = vmatpush1.msra.mxu0 %v1261
    %1474 = vmatprep.subr.mxu0 %v1267
    %1475 = vmatpush1.msra.mxu0 %v1266
    %1476 = vmatprep.subr.mxu0 %v1272
    %1477 = vmatpush1.msra.mxu0 %v1271
    %1478 = vmatprep.subr.mxu0 %v1277
    %1479 = vmatpush1.msra.mxu0 %v1276
    %1480 = vmatprep.subr.mxu0 %v1282
    %1481 = vmatpush1.msra.mxu0 %v1281
    %1482 = vmatprep.subr.mxu0 %v1287
    %1483 = vmatpush1.msra.mxu0 %v1286
    %1484 = vmatprep.subr.mxu0 %v1292
    %1485 = vmatpush1.msra.mxu0 %v1291
    %1486 = vmatprep.subr.mxu0 %v1297
    %1487 = vmatpush1.msra.mxu0 %v1296
    %1488 = vmatprep.subr.mxu0 %v1302
    %1489 = vmatpush1.msra.mxu0 %v1301
    %1490 = vmatprep.subr.mxu0 %v1307
    %1491 = vmatpush1.msra.mxu0 %v1306
    %1492 = vmatprep.subr.mxu0 %v1312
    %1493 = vmatpush1.msra.mxu0 %v1311
    %1494 = vmatprep.subr.mxu0 %v1317
    %1495 = vmatpush1.msra.mxu0 %v1316
    %1496 = vmatprep.subr.mxu0 %v1322
    %1497 = vmatpush1.msra.mxu0 %v1321
    %1498 = vmatprep.subr.mxu0 %v1327
    %1499 = vmatpush1.msra.mxu0 %v1326
    %1500 = vmatprep.subr.mxu0 %v1332
    %1501 = vmatpush1.msra.mxu0 %v1331
    %1502 = vmatprep.subr.mxu0 %v1337
    %1503 = vmatpush1.msra.mxu0 %v1336
    %1504 = vmatprep.subr.mxu0 %v1342
    %1505 = vmatpush1.msra.mxu0 %v1341
    %1506 = vmatprep.subr.mxu0 %v1347
    %1507 = vmatpush1.msra.mxu0 %v1346
    %1508 = vmatprep.subr.mxu0 %v1352
    %1509 = vmatpush1.msra.mxu0 %v1351
    %1510 = vmatprep.subr.mxu0 %v1357
    %1511 = vmatpush1.msra.mxu0 %v1356
    %1512 = vmatprep.subr.mxu0 %v1362
    %1513 = vmatpush1.msra.mxu0 %v1361
    %1514 = vmatprep.subr.mxu0 0.0
    %1515 = vmatpush1.msra.mxu0 0.0
    %1516 = vmatprep.subr.mxu0 0.0
    %1517 = vmatpush1.msra.mxu0 0.0
    %1518 = vmatprep.subr.mxu0 0.0
    %1519 = vmatpush1.msra.mxu0 0.0
    %1520 = vmatprep.subr.mxu0 0.0
    %1521 = vmatpush1.msra.mxu0 0.0
    %1522 = vmatprep.subr.mxu0 0.0
    %1523 = vmatpush1.msra.mxu0 0.0
    %1524 = vmatprep.subr.mxu0 0.0
    %1525 = vmatpush1.msra.mxu0 0.0
    %1526 = vmatprep.subr.mxu0 0.0
    %1527 = vmatpush1.msra.mxu0 0.0
    %1528 = vmatprep.mubr.f32.mxu0 %v1391
    %1529 = vmatmul.mubr.f32.gmra.mrb[0].mxu0 %v1228
    %v1530 = vpop.f32.mrb[0].mxu0
    %v1531 = vadd.f32 %v1377, %v1530
    %v1532 = vpop.f32.mrb[0].mxu0
    %v1533 = vadd.f32 %v1381, %v1532
    %1534 = vdwg.mxu0
    %1535 = vmatprep.subr.mxu0 0.0
    %1536 = vmatpush1.msra.mxu0 %v1243
    %1537 = vmatprep.subr.mxu0 0.0
    %1538 = vmatpush1.msra.mxu0 %v1248
    %1539 = vmatprep.subr.mxu0 0.0
    %1540 = vmatpush1.msra.mxu0 %v1253
    %1541 = vmatprep.subr.mxu0 0.0
    %1542 = vmatpush1.msra.mxu0 %v1258
    %1543 = vmatprep.subr.mxu0 0.0
    %1544 = vmatpush1.msra.mxu0 %v1263
    %1545 = vmatprep.subr.mxu0 0.0
    %1546 = vmatpush1.msra.mxu0 %v1268
    %1547 = vmatprep.subr.mxu0 0.0
    %1548 = vmatpush1.msra.mxu0 %v1273
    %1549 = vmatprep.subr.mxu0 0.0
    %1550 = vmatpush1.msra.mxu0 %v1278
    %1551 = vmatprep.subr.mxu0 0.0
    %1552 = vmatpush1.msra.mxu0 %v1283
    %1553 = vmatprep.subr.mxu0 0.0
    %1554 = vmatpush1.msra.mxu0 %v1288
    %1555 = vmatprep.subr.mxu0 0.0
    %1556 = vmatpush1.msra.mxu0 %v1293
    %1557 = vmatprep.subr.mxu0 0.0
    %1558 = vmatpush1.msra.mxu0 %v1298
    %1559 = vmatprep.subr.mxu0 0.0
    %1560 = vmatpush1.msra.mxu0 %v1303
    %1561 = vmatprep.subr.mxu0 0.0
    %1562 = vmatpush1.msra.mxu0 %v1308
    %1563 = vmatprep.subr.mxu0 0.0
    %1564 = vmatpush1.msra.mxu0 %v1313
    %1565 = vmatprep.subr.mxu0 0.0
    %1566 = vmatpush1.msra.mxu0 %v1318
    %1567 = vmatprep.subr.mxu0 0.0
    %1568 = vmatpush1.msra.mxu0 %v1323
    %1569 = vmatprep.subr.mxu0 0.0
    %1570 = vmatpush1.msra.mxu0 %v1328
    %1571 = vmatprep.subr.mxu0 0.0
    %1572 = vmatpush1.msra.mxu0 %v1333
    %1573 = vmatprep.subr.mxu0 0.0
    %1574 = vmatpush1.msra.mxu0 %v1338
    %1575 = vmatprep.subr.mxu0 0.0
    %1576 = vmatpush1.msra.mxu0 %v1343
    %1577 = vmatprep.subr.mxu0 0.0
    %1578 = vmatpush1.msra.mxu0 %v1348
    %1579 = vmatprep.subr.mxu0 0.0
    %1580 = vmatpush1.msra.mxu0 %v1353
    %1581 = vmatprep.subr.mxu0 0.0
    %1582 = vmatpush1.msra.mxu0 %v1358
    %1583 = vmatprep.subr.mxu0 0.0
    %1584 = vmatpush1.msra.mxu0 %v1363
    %1585 = vmatprep.subr.mxu0 0.0
    %1586 = vmatpush1.msra.mxu0 0.0
    %1587 = vmatprep.subr.mxu0 0.0
    %1588 = vmatpush1.msra.mxu0 0.0
    %1589 = vmatprep.subr.mxu0 0.0
    %1590 = vmatpush1.msra.mxu0 0.0
    %1591 = vmatprep.subr.mxu0 0.0
    %1592 = vmatpush1.msra.mxu0 0.0
    %1593 = vmatprep.subr.mxu0 0.0
    %1594 = vmatpush1.msra.mxu0 0.0
    %1595 = vmatprep.subr.mxu0 0.0
    %1596 = vmatpush1.msra.mxu0 0.0
    %1597 = vmatprep.subr.mxu0 0.0
    %1598 = vmatpush1.msra.mxu0 0.0
    %1599 = vmatprep.mubr.f32.mxu0 %v1391
    %1600 = vmatmul.mubr.f32.gmra.mrb[0].mxu0 %v1228
    %v1601 = vpop.f32.mrb[0].mxu0
    %v1602 = vadd.f32 %v1385, %v1601
    %v1603 = vpop.f32.mrb[0].mxu0
    %1604 = vdwg.mxu0
    %v1605 = vld [vmem:[#allocation9] sm:$0xff]
    %v1606 = vld [vmem:[#allocation9 + $0x8] sm:$0xff]
    %v1607 = vld [vmem:[#allocation9 + $0x10] sm:$0xff]
    %v1608 = vld [vmem:[#allocation9 + $0x18] sm:$0xff]
    %v1609 = vld [vmem:[#allocation9 + $0x20] sm:$0xff]
    %v1610 = vld [vmem:[#allocation9 + $0x28] sm:$0xff]
    %v1611 = vld [vmem:[#allocation9 + $0x30] sm:$0xff]
    %v1612 = vld [vmem:[#allocation9 + $0x38] sm:$0xff]
    %v1613 = vld [vmem:[#allocation9 + $0x40] sm:$0xff]
    %v1614 = vld [vmem:[#allocation9 + $0x48] sm:$0xff]
    %v1615 = vld [vmem:[#allocation9 + $0x50] sm:$0xff]
    %v1616 = vld [vmem:[#allocation9 + $0x58] sm:$0xff]
    %v1617 = vld [vmem:[#allocation9 + $0x60] sm:$0xff]
    %v1618 = vld [vmem:[#allocation9 + $0x68] sm:$0xff]
    %v1619 = vld [vmem:[#allocation9 + $0x70] sm:$0xff]
    %v1620 = vld [vmem:[#allocation9 + $0x78] sm:$0xff]
    %v1621 = vld [vmem:[#allocation9 + $0x80] sm:$0xff]
    %v1622 = vld [vmem:[#allocation9 + $0x88] sm:$0xff]
    %v1623 = vld [vmem:[#allocation9 + $0x90] sm:$0xff]
    %v1624 = vld [vmem:[#allocation9 + $0x98] sm:$0xff]
    %v1625 = vld [vmem:[#allocation9 + $0xa0] sm:$0xff]
    %v1626 = vld [vmem:[#allocation9 + $0xa8] sm:$0xff]
    %v1627 = vld [vmem:[#allocation9 + $0xb0] sm:$0xff]
    %v1628 = vld [vmem:[#allocation9 + $0xb8] sm:$0xff]
    %v1629 = vld [vmem:[#allocation9 + $0xc0] sm:$0xff]
    %v1630 = vld [vmem:[#allocation9 + $0xc8] sm:$0xff]
    %v1631 = vld [vmem:[#allocation9 + $0xd0] sm:$0xff]
    %v1632 = vld [vmem:[#allocation9 + $0xd8] sm:$0xff]
    %v1633 = vld [vmem:[#allocation9 + $0xe0] sm:$0xff]
    %v1634 = vld [vmem:[#allocation9 + $0xe8] sm:$0xff]
    %v1635 = vld [vmem:[#allocation9 + $0xf0] sm:$0xff]
    %v1636 = vld [vmem:[#allocation9 + $0xf8] sm:$0xff]
    %v1637 = vld [vmem:[#allocation9 + $0x100] sm:$0xff]
    %v1638 = vld [vmem:[#allocation9 + $0x108] sm:$0xff]
    %v1639 = vld [vmem:[#allocation9 + $0x110] sm:$0xff]
    %v1640 = vld [vmem:[#allocation9 + $0x118] sm:$0xff]
    %v1641 = vld [vmem:[#allocation9 + $0x120] sm:$0xff]
    %v1642 = vld [vmem:[#allocation9 + $0x128] sm:$0xff]
    %v1643 = vld [vmem:[#allocation9 + $0x130] sm:$0xff]
    %v1644 = vld [vmem:[#allocation9 + $0x138] sm:$0xff]
    %v1645 = vld [vmem:[#allocation9 + $0x140] sm:$0xff]
    %v1646 = vld [vmem:[#allocation9 + $0x148] sm:$0xff]
    %v1647 = vld [vmem:[#allocation9 + $0x150] sm:$0xff]
    %v1648 = vld [vmem:[#allocation9 + $0x158] sm:$0xff]
    %v1649 = vld [vmem:[#allocation9 + $0x160] sm:$0xff]
    %v1650 = vld [vmem:[#allocation9 + $0x168] sm:$0xff]
    %v1651 = vld [vmem:[#allocation9 + $0x170] sm:$0xff]
    %v1652 = vld [vmem:[#allocation9 + $0x178] sm:$0xff]
    %v1653 = vld [vmem:[#allocation9 + $0x180] sm:$0xff]
    %v1654 = vld [vmem:[#allocation9 + $0x188] sm:$0xff]
    %v1655 = vld [vmem:[#allocation9 + $0x190] sm:$0xff]
    %v1656 = vld [vmem:[#allocation9 + $0x198] sm:$0xff]
    %v1657 = vld [vmem:[#allocation9 + $0x1a0] sm:$0xff]
    %v1658 = vld [vmem:[#allocation9 + $0x1a8] sm:$0xff]
    %v1659 = vld [vmem:[#allocation9 + $0x1b0] sm:$0xff]
    %v1660 = vld [vmem:[#allocation9 + $0x1b8] sm:$0xff]
    %v1661 = vld [vmem:[#allocation9 + $0x1c0] sm:$0xff]
    %v1662 = vld [vmem:[#allocation9 + $0x1c8] sm:$0xff]
    %v1663 = vld [vmem:[#allocation9 + $0x1d0] sm:$0xff]
    %v1664 = vld [vmem:[#allocation9 + $0x1d8] sm:$0xff]
    %v1665 = vld [vmem:[#allocation9 + $0x1e0] sm:$0xff]
    %v1666 = vld [vmem:[#allocation9 + $0x1e8] sm:$0xff]
    %v1667 = vld [vmem:[#allocation9 + $0x1f0] sm:$0xff]
    %v1668 = vld [vmem:[#allocation9 + $0x1f8] sm:$0xff]
    %v1669 = vld [vmem:[#allocation9 + $0x200] sm:$0xff]
    %v1670 = vld [vmem:[#allocation9 + $0x208] sm:$0xff]
    %v1671 = vld [vmem:[#allocation9 + $0x210] sm:$0xff]
    %v1672 = vld [vmem:[#allocation9 + $0x218] sm:$0xff]
    %v1673 = vld [vmem:[#allocation9 + $0x220] sm:$0xff]
    %v1674 = vld [vmem:[#allocation9 + $0x228] sm:$0xff]
    %v1675 = vld [vmem:[#allocation9 + $0x230] sm:$0xff]
    %v1676 = vld [vmem:[#allocation9 + $0x238] sm:$0xff]
    %v1677 = vld [vmem:[#allocation9 + $0x240] sm:$0xff]
    %v1678 = vld [vmem:[#allocation9 + $0x248] sm:$0xff]
    %v1679 = vld [vmem:[#allocation9 + $0x250] sm:$0xff]
    %v1680 = vld [vmem:[#allocation9 + $0x258] sm:$0xff]
    %v1681 = vld [vmem:[#allocation9 + $0x260] sm:$0xff]
    %v1682 = vld [vmem:[#allocation9 + $0x268] sm:$0xff]
    %v1683 = vld [vmem:[#allocation9 + $0x270] sm:$0xff]
    %v1684 = vld [vmem:[#allocation9 + $0x278] sm:$0xff]
    %v1685 = vld [vmem:[#allocation9 + $0x280] sm:$0xff]
    %v1686 = vld [vmem:[#allocation9 + $0x288] sm:$0xff]
    %v1687 = vld [vmem:[#allocation9 + $0x290] sm:$0xff]
    %v1688 = vld [vmem:[#allocation9 + $0x298] sm:$0xff]
    %v1689 = vld [vmem:[#allocation9 + $0x2a0] sm:$0xff]
    %v1690 = vld [vmem:[#allocation9 + $0x2a8] sm:$0xff]
    %v1691 = vld [vmem:[#allocation9 + $0x2b0] sm:$0xff]
    %v1692 = vld [vmem:[#allocation9 + $0x2b8] sm:$0xff]
    %v1693 = vld [vmem:[#allocation9 + $0x2c0] sm:$0xff]
    %v1694 = vld [vmem:[#allocation9 + $0x2c8] sm:$0xff]
    %v1695 = vld [vmem:[#allocation9 + $0x2d0] sm:$0xff]
    %v1696 = vld [vmem:[#allocation9 + $0x2d8] sm:$0xff]
    %v1697 = vld [vmem:[#allocation9 + $0x2e0] sm:$0xff]
    %v1698 = vld [vmem:[#allocation9 + $0x2e8] sm:$0xff]
    %v1699 = vld [vmem:[#allocation9 + $0x2f0] sm:$0xff]
    %v1700 = vld [vmem:[#allocation9 + $0x2f8] sm:$0xff]
    %v1701 = vld [vmem:[#allocation9 + $0x300] sm:$0xff]
    %v1702 = vld [vmem:[#allocation9 + $0x308] sm:$0xff]
    %v1703 = vld [vmem:[#allocation9 + $0x310] sm:$0xff]
    %v1704 = vld [vmem:[#allocation9 + $0x318] sm:$0xff]
    %v1705 = vld [vmem:[#allocation9 + $0x320] sm:$0xff]
    %v1706 = vld [vmem:[#allocation9 + $0x328] sm:$0xff]
    %v1707 = vld [vmem:[#allocation9 + $0x330] sm:$0xff]
    %v1708 = vld [vmem:[#allocation9 + $0x338] sm:$0xff]
    %v1709 = vld [vmem:[#allocation9 + $0x340] sm:$0xff]
    %v1710 = vld [vmem:[#allocation9 + $0x348] sm:$0xff]
    %v1711 = vld [vmem:[#allocation9 + $0x350] sm:$0xff]
    %v1712 = vld [vmem:[#allocation9 + $0x358] sm:$0xff]
    %v1713 = vld [vmem:[#allocation9 + $0x360] sm:$0xff]
    %v1714 = vld [vmem:[#allocation9 + $0x368] sm:$0xff]
    %v1715 = vld [vmem:[#allocation9 + $0x370] sm:$0xff]
    %v1716 = vld [vmem:[#allocation9 + $0x378] sm:$0xff]
    %v1717 = vld [vmem:[#allocation9 + $0x380] sm:$0xff]
    %v1718 = vld [vmem:[#allocation9 + $0x388] sm:$0xff]
    %v1719 = vld [vmem:[#allocation9 + $0x390] sm:$0xff]
    %v1720 = vld [vmem:[#allocation9 + $0x398] sm:$0xff]
    %v1721 = vld [vmem:[#allocation9 + $0x3a0] sm:$0xff]
    %v1722 = vld [vmem:[#allocation9 + $0x3a8] sm:$0xff]
    %v1723 = vld [vmem:[#allocation9 + $0x3b0] sm:$0xff]
    %v1724 = vld [vmem:[#allocation9 + $0x3b8] sm:$0xff]
    %v1725 = vld [vmem:[#allocation9 + $0x3c0] sm:$0xff]
    %v1726 = vld [vmem:[#allocation9 + $0x3c8] sm:$0xff]
    %v1727 = vld [vmem:[#allocation9 + $0x3d0] sm:$0xff]
    %v1728 = vld [vmem:[#allocation9 + $0x3d8] sm:$0xff]
    %v1729 = vld [vmem:[#allocation9 + $0x3e0] sm:$0xff]
    %v1730 = vld [vmem:[%s11] sm:$0x1f]
    %v1732 = vlaneseq
    %v1733 = vshrl.u32 %v1732, 7
    %v1734 = vsub.s32 0, %v1733
    %v1735 = vrot.slane %v1730, %v1734
    %v1736 = vlaneseq
    %v1737 = vshrl.u32 %v1736, 7
    %v1738 = vsub.s32 1, %v1737
    %v1739 = vrot.slane %v1730, %v1738
    %v1740 = vlaneseq
    %v1741 = vshrl.u32 %v1740, 7
    %v1742 = vsub.s32 2, %v1741
    %v1743 = vrot.slane %v1730, %v1742
    %v1744 = vlaneseq
    %v1745 = vshrl.u32 %v1744, 7
    %v1746 = vsub.s32 3, %v1745
    %v1747 = vrot.slane %v1730, %v1746
    %v1748 = vlaneseq
    %v1749 = vshrl.u32 %v1748, 7
    %v1750 = vsub.s32 4, %v1749
    %v1751 = vrot.slane %v1730, %v1750
    %v1758 = vcombine.high %v1238, %v1238
    %v1759 = vsel %vm543, %v1758, 0
    %1761 = vmatprep.subr.mxu0 %v1606
    %1762 = vmatpush1.msra.mxu0 %v1605
    %1763 = vmatprep.subr.mxu0 %v1611
    %1764 = vmatpush1.msra.mxu0 %v1610
    %1765 = vmatprep.subr.mxu0 %v1616
    %1766 = vmatpush1.msra.mxu0 %v1615
    %1767 = vmatprep.subr.mxu0 %v1621
    %1768 = vmatpush1.msra.mxu0 %v1620
    %1769 = vmatprep.subr.mxu0 %v1626
    %1770 = vmatpush1.msra.mxu0 %v1625
    %1771 = vmatprep.subr.mxu0 %v1631
    %1772 = vmatpush1.msra.mxu0 %v1630
    %1773 = vmatprep.subr.mxu0 %v1636
    %1774 = vmatpush1.msra.mxu0 %v1635
    %1775 = vmatprep.subr.mxu0 %v1641
    %1776 = vmatpush1.msra.mxu0 %v1640
    %1777 = vmatprep.subr.mxu0 %v1646
    %1778 = vmatpush1.msra.mxu0 %v1645
    %1779 = vmatprep.subr.mxu0 %v1651
    %1780 = vmatpush1.msra.mxu0 %v1650
    %1781 = vmatprep.subr.mxu0 %v1656
    %1782 = vmatpush1.msra.mxu0 %v1655
    %1783 = vmatprep.subr.mxu0 %v1661
    %1784 = vmatpush1.msra.mxu0 %v1660
    %1785 = vmatprep.subr.mxu0 %v1666
    %1786 = vmatpush1.msra.mxu0 %v1665
    %1787 = vmatprep.subr.mxu0 %v1671
    %1788 = vmatpush1.msra.mxu0 %v1670
    %1789 = vmatprep.subr.mxu0 %v1676
    %1790 = vmatpush1.msra.mxu0 %v1675
    %1791 = vmatprep.subr.mxu0 %v1681
    %1792 = vmatpush1.msra.mxu0 %v1680
    %1793 = vmatprep.subr.mxu0 %v1686
    %1794 = vmatpush1.msra.mxu0 %v1685
    %1795 = vmatprep.subr.mxu0 %v1691
    %1796 = vmatpush1.msra.mxu0 %v1690
    %1797 = vmatprep.subr.mxu0 %v1696
    %1798 = vmatpush1.msra.mxu0 %v1695
    %1799 = vmatprep.subr.mxu0 %v1701
    %1800 = vmatpush1.msra.mxu0 %v1700
    %1801 = vmatprep.subr.mxu0 %v1706
    %1802 = vmatpush1.msra.mxu0 %v1705
    %1803 = vmatprep.subr.mxu0 %v1711
    %1804 = vmatpush1.msra.mxu0 %v1710
    %1805 = vmatprep.subr.mxu0 %v1716
    %1806 = vmatpush1.msra.mxu0 %v1715
    %1807 = vmatprep.subr.mxu0 %v1721
    %1808 = vmatpush1.msra.mxu0 %v1720
    %1809 = vmatprep.subr.mxu0 %v1726
    %1810 = vmatpush1.msra.mxu0 %v1725
    %1811 = vmatprep.subr.mxu0 0.0
    %1812 = vmatpush1.msra.mxu0 0.0
    %1813 = vmatprep.subr.mxu0 0.0
    %1814 = vmatpush1.msra.mxu0 0.0
    %1815 = vmatprep.subr.mxu0 0.0
    %1816 = vmatpush1.msra.mxu0 0.0
    %1817 = vmatprep.subr.mxu0 0.0
    %1818 = vmatpush1.msra.mxu0 0.0
    %1819 = vmatprep.subr.mxu0 0.0
    %1820 = vmatpush1.msra.mxu0 0.0
    %1821 = vmatprep.subr.mxu0 0.0
    %1822 = vmatpush1.msra.mxu0 0.0
    %1823 = vmatprep.subr.mxu0 0.0
    %1824 = vmatpush1.msra.mxu0 0.0
    %1825 = vmatprep.mubr.f32.mxu0 %v1759
    %1826 = vmatmul.mubr.f32.gmra.mrb[0].mxu0 %v1238
    %v1827 = vpop.f32.mrb[0].mxu0
    %v1828 = vadd.f32 %v1735, %v1827
    %v1829 = vpop.f32.mrb[0].mxu0
    %v1830 = vadd.f32 %v1739, %v1829
    %1831 = vdwg.mxu0
    %1832 = vmatprep.subr.mxu0 %v1608
    %1833 = vmatpush1.msra.mxu0 %v1607
    %1834 = vmatprep.subr.mxu0 %v1613
    %1835 = vmatpush1.msra.mxu0 %v1612
    %1836 = vmatprep.subr.mxu0 %v1618
    %1837 = vmatpush1.msra.mxu0 %v1617
    %1838 = vmatprep.subr.mxu0 %v1623
    %1839 = vmatpush1.msra.mxu0 %v1622
    %1840 = vmatprep.subr.mxu0 %v1628
    %1841 = vmatpush1.msra.mxu0 %v1627
    %1842 = vmatprep.subr.mxu0 %v1633
    %1843 = vmatpush1.msra.mxu0 %v1632
    %1844 = vmatprep.subr.mxu0 %v1638
    %1845 = vmatpush1.msra.mxu0 %v1637
    %1846 = vmatprep.subr.mxu0 %v1643
    %1847 = vmatpush1.msra.mxu0 %v1642
    %1848 = vmatprep.subr.mxu0 %v1648
    %1849 = vmatpush1.msra.mxu0 %v1647
    %1850 = vmatprep.subr.mxu0 %v1653
    %1851 = vmatpush1.msra.mxu0 %v1652
    %1852 = vmatprep.subr.mxu0 %v1658
    %1853 = vmatpush1.msra.mxu0 %v1657
    %1854 = vmatprep.subr.mxu0 %v1663
    %1855 = vmatpush1.msra.mxu0 %v1662
    %1856 = vmatprep.subr.mxu0 %v1668
    %1857 = vmatpush1.msra.mxu0 %v1667
    %1858 = vmatprep.subr.mxu0 %v1673
    %1859 = vmatpush1.msra.mxu0 %v1672
    %1860 = vmatprep.subr.mxu0 %v1678
    %1861 = vmatpush1.msra.mxu0 %v1677
    %1862 = vmatprep.subr.mxu0 %v1683
    %1863 = vmatpush1.msra.mxu0 %v1682
    %1864 = vmatprep.subr.mxu0 %v1688
    %1865 = vmatpush1.msra.mxu0 %v1687
    %1866 = vmatprep.subr.mxu0 %v1693
    %1867 = vmatpush1.msra.mxu0 %v1692
    %1868 = vmatprep.subr.mxu0 %v1698
    %1869 = vmatpush1.msra.mxu0 %v1697
    %1870 = vmatprep.subr.mxu0 %v1703
    %1871 = vmatpush1.msra.mxu0 %v1702
    %1872 = vmatprep.subr.mxu0 %v1708
    %1873 = vmatpush1.msra.mxu0 %v1707
    %1874 = vmatprep.subr.mxu0 %v1713
    %1875 = vmatpush1.msra.mxu0 %v1712
    %1876 = vmatprep.subr.mxu0 %v1718
    %1877 = vmatpush1.msra.mxu0 %v1717
    %1878 = vmatprep.subr.mxu0 %v1723
    %1879 = vmatpush1.msra.mxu0 %v1722
    %1880 = vmatprep.subr.mxu0 %v1728
    %1881 = vmatpush1.msra.mxu0 %v1727
    %1882 = vmatprep.subr.mxu0 0.0
    %1883 = vmatpush1.msra.mxu0 0.0
    %1884 = vmatprep.subr.mxu0 0.0
    %1885 = vmatpush1.msra.mxu0 0.0
    %1886 = vmatprep.subr.mxu0 0.0
    %1887 = vmatpush1.msra.mxu0 0.0
    %1888 = vmatprep.subr.mxu0 0.0
    %1889 = vmatpush1.msra.mxu0 0.0
    %1890 = vmatprep.subr.mxu0 0.0
    %1891 = vmatpush1.msra.mxu0 0.0
    %1892 = vmatprep.subr.mxu0 0.0
    %1893 = vmatpush1.msra.mxu0 0.0
    %1894 = vmatprep.subr.mxu0 0.0
    %1895 = vmatpush1.msra.mxu0 0.0
    %1896 = vmatprep.mubr.f32.mxu0 %v1759
    %1897 = vmatmul.mubr.f32.gmra.mrb[0].mxu0 %v1238
    %v1898 = vpop.f32.mrb[0].mxu0
    %v1899 = vadd.f32 %v1743, %v1898
    %v1900 = vpop.f32.mrb[0].mxu0
    %v1901 = vadd.f32 %v1747, %v1900
    %1902 = vdwg.mxu0
    %1903 = vmatprep.subr.mxu0 0.0
    %1904 = vmatpush1.msra.mxu0 %v1609
    %1905 = vmatprep.subr.mxu0 0.0
    %1906 = vmatpush1.msra.mxu0 %v1614
    %1907 = vmatprep.subr.mxu0 0.0
    %1908 = vmatpush1.msra.mxu0 %v1619
    %1909 = vmatprep.subr.mxu0 0.0
    %1910 = vmatpush1.msra.mxu0 %v1624
    %1911 = vmatprep.subr.mxu0 0.0
    %1912 = vmatpush1.msra.mxu0 %v1629
    %1913 = vmatprep.subr.mxu0 0.0
    %1914 = vmatpush1.msra.mxu0 %v1634
    %1915 = vmatprep.subr.mxu0 0.0
    %1916 = vmatpush1.msra.mxu0 %v1639
    %1917 = vmatprep.subr.mxu0 0.0
    %1918 = vmatpush1.msra.mxu0 %v1644
    %1919 = vmatprep.subr.mxu0 0.0
    %1920 = vmatpush1.msra.mxu0 %v1649
    %1921 = vmatprep.subr.mxu0 0.0
    %1922 = vmatpush1.msra.mxu0 %v1654
    %1923 = vmatprep.subr.mxu0 0.0
    %1924 = vmatpush1.msra.mxu0 %v1659
    %1925 = vmatprep.subr.mxu0 0.0
    %1926 = vmatpush1.msra.mxu0 %v1664
    %1927 = vmatprep.subr.mxu0 0.0
    %1928 = vmatpush1.msra.mxu0 %v1669
    %1929 = vmatprep.subr.mxu0 0.0
    %1930 = vmatpush1.msra.mxu0 %v1674
    %1931 = vmatprep.subr.mxu0 0.0
    %1932 = vmatpush1.msra.mxu0 %v1679
    %1933 = vmatprep.subr.mxu0 0.0
    %1934 = vmatpush1.msra.mxu0 %v1684
    %1935 = vmatprep.subr.mxu0 0.0
    %1936 = vmatpush1.msra.mxu0 %v1689
    %1937 = vmatprep.subr.mxu0 0.0
    %1938 = vmatpush1.msra.mxu0 %v1694
    %1939 = vmatprep.subr.mxu0 0.0
    %1940 = vmatpush1.msra.mxu0 %v1699
    %1941 = vmatprep.subr.mxu0 0.0
    %1942 = vmatpush1.msra.mxu0 %v1704
    %1943 = vmatprep.subr.mxu0 0.0
    %1944 = vmatpush1.msra.mxu0 %v1709
    %1945 = vmatprep.subr.mxu0 0.0
    %1946 = vmatpush1.msra.mxu0 %v1714
    %1947 = vmatprep.subr.mxu0 0.0
    %1948 = vmatpush1.msra.mxu0 %v1719
    %1949 = vmatprep.subr.mxu0 0.0
    %1950 = vmatpush1.msra.mxu0 %v1724
    %1951 = vmatprep.subr.mxu0 0.0
    %1952 = vmatpush1.msra.mxu0 %v1729
    %1953 = vmatprep.subr.mxu0 0.0
    %1954 = vmatpush1.msra.mxu0 0.0
    %1955 = vmatprep.subr.mxu0 0.0
    %1956 = vmatpush1.msra.mxu0 0.0
    %1957 = vmatprep.subr.mxu0 0.0
    %1958 = vmatpush1.msra.mxu0 0.0
    %1959 = vmatprep.subr.mxu0 0.0
    %1960 = vmatpush1.msra.mxu0 0.0
    %1961 = vmatprep.subr.mxu0 0.0
    %1962 = vmatpush1.msra.mxu0 0.0
    %1963 = vmatprep.subr.mxu0 0.0
    %1964 = vmatpush1.msra.mxu0 0.0
    %1965 = vmatprep.subr.mxu0 0.0
    %1966 = vmatpush1.msra.mxu0 0.0
    %1967 = vmatprep.mubr.f32.mxu0 %v1759
    %1968 = vmatmul.mubr.f32.gmra.mrb[0].mxu0 %v1238
    %v1969 = vpop.f32.mrb[0].mxu0
    %v1970 = vadd.f32 %v1751, %v1969
    %v1971 = vpop.f32.mrb[0].mxu0
    %1972 = vdwg.mxu0
    %v1973 = vld [vmem:[%s12] sm:$0x1f]
    %v1974 = vld [vmem:[%s13] sm:$0x1f]
    %v1975 = vsel %vm760, %v1460, 0.0
    %v1976 = vrot.slane %v1975, 4
    %v1977 = vadd.f32 %v1975, %v1976
    %v1978 = vrot.slane %v1977, 2
    %v1979 = vadd.f32 %v1977, %v1978
    %v1980 = vrot.slane %v1979, 1
    %v1981 = vadd.f32 %v1979, %v1980
    %v1982 = vsel %vm760, %v1462, 0.0
    %v1983 = vrot.slane %v1982, 4
    %v1984 = vadd.f32 %v1982, %v1983
    %v1985 = vrot.slane %v1984, 2
    %v1986 = vadd.f32 %v1984, %v1985
    %v1987 = vrot.slane %v1986, 1
    %v1988 = vadd.f32 %v1986, %v1987
    %v1989 = vsel %vm760, %v1531, 0.0
    %v1990 = vrot.slane %v1989, 4
    %v1991 = vadd.f32 %v1989, %v1990
    %v1992 = vrot.slane %v1991, 2
    %v1993 = vadd.f32 %v1991, %v1992
    %v1994 = vrot.slane %v1993, 1
    %v1995 = vadd.f32 %v1993, %v1994
    %v1996 = vsel %vm760, %v1533, 0.0
    %v1997 = vrot.slane %v1996, 4
    %v1998 = vadd.f32 %v1996, %v1997
    %v1999 = vrot.slane %v1998, 2
    %v2000 = vadd.f32 %v1998, %v1999
    %v2001 = vrot.slane %v2000, 1
    %v2002 = vadd.f32 %v2000, %v2001
    %v2003 = vsel %vm789, %v1602, 0.0
    %v2004 = vrot.slane %v2003, 4
    %v2005 = vadd.f32 %v2003, %v2004
    %v2006 = vrot.slane %v2005, 2
    %v2007 = vadd.f32 %v2005, %v2006
    %v2008 = vrot.slane %v2007, 1
    %v2009 = vadd.f32 %v2007, %v2008
    %v2010 = vmul.f32 %v1981, 0.33333334
    %v2011 = vmul.f32 %v1988, 0.33333334
    %v2012 = vmul.f32 %v1995, 0.33333334
    %v2013 = vmul.f32 %v2002, 0.33333334
    %v2014 = vmul.f32 %v2009, 0.33333334
    %v2015 = vsub.f32 %v1460, %v2010
    %v2016 = vsub.f32 %v1462, %v2011
    %v2017 = vsub.f32 %v1531, %v2012
    %v2018 = vsub.f32 %v1533, %v2013
    %v2019 = vsub.f32 %v1602, %v2014
    %v2020 = vmul.f32 %v2015, %v2015
    %v2021 = vmul.f32 %v2016, %v2016
    %v2022 = vmul.f32 %v2017, %v2017
    %v2023 = vmul.f32 %v2018, %v2018
    %v2024 = vmul.f32 %v2019, %v2019
    %v2025 = vsel %vm760, %v2020, 0.0
    %v2026 = vrot.slane %v2025, 4
    %v2027 = vadd.f32 %v2025, %v2026
    %v2028 = vrot.slane %v2027, 2
    %v2029 = vadd.f32 %v2027, %v2028
    %v2030 = vrot.slane %v2029, 1
    %v2031 = vadd.f32 %v2029, %v2030
    %v2032 = vsel %vm760, %v2021, 0.0
    %v2033 = vrot.slane %v2032, 4
    %v2034 = vadd.f32 %v2032, %v2033
    %v2035 = vrot.slane %v2034, 2
    %v2036 = vadd.f32 %v2034, %v2035
    %v2037 = vrot.slane %v2036, 1
    %v2038 = vadd.f32 %v2036, %v2037
    %v2039 = vsel %vm760, %v2022, 0.0
    %v2040 = vrot.slane %v2039, 4
    %v2041 = vadd.f32 %v2039, %v2040
    %v2042 = vrot.slane %v2041, 2
    %v2043 = vadd.f32 %v2041, %v2042
    %v2044 = vrot.slane %v2043, 1
    %v2045 = vadd.f32 %v2043, %v2044
    %v2046 = vsel %vm760, %v2023, 0.0
    %v2047 = vrot.slane %v2046, 4
    %v2048 = vadd.f32 %v2046, %v2047
    %v2049 = vrot.slane %v2048, 2
    %v2050 = vadd.f32 %v2048, %v2049
    %v2051 = vrot.slane %v2050, 1
    %v2052 = vadd.f32 %v2050, %v2051
    %v2053 = vsel %vm789, %v2024, 0.0
    %v2054 = vrot.slane %v2053, 4
    %v2055 = vadd.f32 %v2053, %v2054
    %v2056 = vrot.slane %v2055, 2
    %v2057 = vadd.f32 %v2055, %v2056
    %v2058 = vrot.slane %v2057, 1
    %v2059 = vadd.f32 %v2057, %v2058
    %v2060 = vmul.f32 %v2031, 0.33333334
    %v2061 = vmul.f32 %v2038, 0.33333334
    %v2062 = vmul.f32 %v2045, 0.33333334
    %v2063 = vmul.f32 %v2052, 0.33333334
    %v2064 = vmul.f32 %v2059, 0.33333334
    %v2065 = vadd.f32 %v2060, 1e-05
    %v2066 = vadd.f32 %v2061, 1e-05
    %v2067 = vadd.f32 %v2062, 1e-05
    %v2068 = vadd.f32 %v2063, 1e-05
    %v2069 = vadd.f32 %v2064, 1e-05
    %v2070 = vrsqrt.pop %v2065
    %v2071 = vrsqrt.pop %v2066
    %v2072 = vrsqrt.pop %v2067
    %v2073 = vrsqrt.pop %v2068
    %v2074 = vrsqrt.pop %v2069
    %v2080 = vcombine.low %v2070, %v2071
    %v2081 = vcombine.low %v2072, %v2073
    %v2083 = vunpack.c.l.s4 1966171168
    %v2084 = vunpack.c.0.s8 %v2083
    %v2085 = vlaneseq
    %v2086 = vshrl.u32 %v2085, 7
    %v2087 = vsub.s32 %v2084, %v2086
    %v2088 = vrot.slane %v2080, %v2087
    %v2090 = vunpack.c.l.s4 1966171168
    %v2091 = vunpack.c.0.s8 %v2090
    %v2092 = vlaneseq
    %v2093 = vshrl.u32 %v2092, 7
    %v2094 = vsub.s32 %v2091, %v2093
    %v2095 = vrot.slane %v2081, %v2094
    %v2097 = vunpack.c.l.s4 1966171168
    %v2098 = vunpack.c.0.s8 %v2097
    %v2099 = vlaneseq
    %v2100 = vshrl.u32 %v2099, 7
    %v2101 = vsub.s32 %v2098, %v2100
    %v2102 = vrot.slane %v2074, %v2101
    %v2103 = vcombine.low %v2088, %v2095
    %v2105 = vunpack.c.l.s4 1966171168
    %v2106 = vunpack.c.0.s8 %v2105
    %v2107 = vlaneseq
    %v2108 = vshrl.u32 %v2107, 7
    %v2109 = vsub.s32 %v2106, %v2108
    %v2110 = vrot.slane %v2103, %v2109
    %v2112 = vunpack.c.l.s4 1966171168
    %v2113 = vunpack.c.0.s8 %v2112
    %v2114 = vlaneseq
    %v2115 = vshrl.u32 %v2114, 7
    %v2116 = vsub.s32 %v2113, %v2115
    %v2117 = vrot.slane %v2102, %v2116
    %v2118 = vcombine.low %v2110, %v2117
    %v2120 = vmul.f32 %v1973, %v2118
    %v2122 = vlaneseq
    %v2123 = vshrl.u32 %v2122, 7
    %v2124 = vsub.s32 0, %v2123
    %v2125 = vrot.slane %v2120, %v2124
    %v2126 = vlaneseq
    %v2127 = vshrl.u32 %v2126, 7
    %v2128 = vsub.s32 1, %v2127
    %v2129 = vrot.slane %v2120, %v2128
    %v2130 = vlaneseq
    %v2131 = vshrl.u32 %v2130, 7
    %v2132 = vsub.s32 2, %v2131
    %v2133 = vrot.slane %v2120, %v2132
    %v2134 = vlaneseq
    %v2135 = vshrl.u32 %v2134, 7
    %v2136 = vsub.s32 3, %v2135
    %v2137 = vrot.slane %v2120, %v2136
    %v2138 = vlaneseq
    %v2139 = vshrl.u32 %v2138, 7
    %v2140 = vsub.s32 4, %v2139
    %v2141 = vrot.slane %v2120, %v2140
    %v2147 = vmul.f32 %v2015, %v2125
    %v2148 = vmul.f32 %v2016, %v2129
    %v2149 = vmul.f32 %v2017, %v2133
    %v2150 = vmul.f32 %v2018, %v2137
    %v2151 = vmul.f32 %v2019, %v2141
    %v2153 = vlaneseq
    %v2154 = vshrl.u32 %v2153, 7
    %v2155 = vsub.s32 0, %v2154
    %v2156 = vrot.slane %v1974, %v2155
    %v2157 = vlaneseq
    %v2158 = vshrl.u32 %v2157, 7
    %v2159 = vsub.s32 1, %v2158
    %v2160 = vrot.slane %v1974, %v2159
    %v2161 = vlaneseq
    %v2162 = vshrl.u32 %v2161, 7
    %v2163 = vsub.s32 2, %v2162
    %v2164 = vrot.slane %v1974, %v2163
    %v2165 = vlaneseq
    %v2166 = vshrl.u32 %v2165, 7
    %v2167 = vsub.s32 3, %v2166
    %v2168 = vrot.slane %v1974, %v2167
    %v2169 = vlaneseq
    %v2170 = vshrl.u32 %v2169, 7
    %v2171 = vsub.s32 4, %v2170
    %v2172 = vrot.slane %v1974, %v2171
    %v2178 = vadd.f32 %v2147, %v2156
    %v2179 = vadd.f32 %v2148, %v2160
    %v2180 = vadd.f32 %v2149, %v2164
    %v2181 = vadd.f32 %v2150, %v2168
    %v2182 = vadd.f32 %v2151, %v2172
    %v2183 = vsel %vm760, %v1828, 0.0
    %v2184 = vrot.slane %v2183, 4
    %v2185 = vadd.f32 %v2183, %v2184
    %v2186 = vrot.slane %v2185, 2
    %v2187 = vadd.f32 %v2185, %v2186
    %v2188 = vrot.slane %v2187, 1
    %v2189 = vadd.f32 %v2187, %v2188
    %v2190 = vsel %vm760, %v1830, 0.0
    %v2191 = vrot.slane %v2190, 4
    %v2192 = vadd.f32 %v2190, %v2191
    %v2193 = vrot.slane %v2192, 2
    %v2194 = vadd.f32 %v2192, %v2193
    %v2195 = vrot.slane %v2194, 1
    %v2196 = vadd.f32 %v2194, %v2195
    %v2197 = vsel %vm760, %v1899, 0.0
    %v2198 = vrot.slane %v2197, 4
    %v2199 = vadd.f32 %v2197, %v2198
    %v2200 = vrot.slane %v2199, 2
    %v2201 = vadd.f32 %v2199, %v2200
    %v2202 = vrot.slane %v2201, 1
    %v2203 = vadd.f32 %v2201, %v2202
    %v2204 = vsel %vm760, %v1901, 0.0
    %v2205 = vrot.slane %v2204, 4
    %v2206 = vadd.f32 %v2204, %v2205
    %v2207 = vrot.slane %v2206, 2
    %v2208 = vadd.f32 %v2206, %v2207
    %v2209 = vrot.slane %v2208, 1
    %v2210 = vadd.f32 %v2208, %v2209
    %v2211 = vsel %vm789, %v1970, 0.0
    %v2212 = vrot.slane %v2211, 4
    %v2213 = vadd.f32 %v2211, %v2212
    %v2214 = vrot.slane %v2213, 2
    %v2215 = vadd.f32 %v2213, %v2214
    %v2216 = vrot.slane %v2215, 1
    %v2217 = vadd.f32 %v2215, %v2216
    %v2218 = vmul.f32 %v2189, 0.33333334
    %v2219 = vmul.f32 %v2196, 0.33333334
    %v2220 = vmul.f32 %v2203, 0.33333334
    %v2221 = vmul.f32 %v2210, 0.33333334
    %v2222 = vmul.f32 %v2217, 0.33333334
    %v2223 = vsub.f32 %v1828, %v2218
    %v2224 = vsub.f32 %v1830, %v2219
    %v2225 = vsub.f32 %v1899, %v2220
    %v2226 = vsub.f32 %v1901, %v2221
    %v2227 = vsub.f32 %v1970, %v2222
    %v2228 = vmul.f32 %v2223, %v2223
    %v2229 = vmul.f32 %v2224, %v2224
    %v2230 = vmul.f32 %v2225, %v2225
    %v2231 = vmul.f32 %v2226, %v2226
    %v2232 = vmul.f32 %v2227, %v2227
    %v2233 = vsel %vm760, %v2228, 0.0
    %v2234 = vrot.slane %v2233, 4
    %v2235 = vadd.f32 %v2233, %v2234
    %v2236 = vrot.slane %v2235, 2
    %v2237 = vadd.f32 %v2235, %v2236
    %v2238 = vrot.slane %v2237, 1
    %v2239 = vadd.f32 %v2237, %v2238
    %v2240 = vsel %vm760, %v2229, 0.0
    %v2241 = vrot.slane %v2240, 4
    %v2242 = vadd.f32 %v2240, %v2241
    %v2243 = vrot.slane %v2242, 2
    %v2244 = vadd.f32 %v2242, %v2243
    %v2245 = vrot.slane %v2244, 1
    %v2246 = vadd.f32 %v2244, %v2245
    %v2247 = vsel %vm760, %v2230, 0.0
    %v2248 = vrot.slane %v2247, 4
    %v2249 = vadd.f32 %v2247, %v2248
    %v2250 = vrot.slane %v2249, 2
    %v2251 = vadd.f32 %v2249, %v2250
    %v2252 = vrot.slane %v2251, 1
    %v2253 = vadd.f32 %v2251, %v2252
    %v2254 = vsel %vm760, %v2231, 0.0
    %v2255 = vrot.slane %v2254, 4
    %v2256 = vadd.f32 %v2254, %v2255
    %v2257 = vrot.slane %v2256, 2
    %v2258 = vadd.f32 %v2256, %v2257
    %v2259 = vrot.slane %v2258, 1
    %v2260 = vadd.f32 %v2258, %v2259
    %v2261 = vsel %vm789, %v2232, 0.0
    %v2262 = vrot.slane %v2261, 4
    %v2263 = vadd.f32 %v2261, %v2262
    %v2264 = vrot.slane %v2263, 2
    %v2265 = vadd.f32 %v2263, %v2264
    %v2266 = vrot.slane %v2265, 1
    %v2267 = vadd.f32 %v2265, %v2266
    %v2268 = vmul.f32 %v2239, 0.33333334
    %v2269 = vmul.f32 %v2246, 0.33333334
    %v2270 = vmul.f32 %v2253, 0.33333334
    %v2271 = vmul.f32 %v2260, 0.33333334
    %v2272 = vmul.f32 %v2267, 0.33333334
    %v2273 = vadd.f32 %v2268, 1e-05
    %v2274 = vadd.f32 %v2269, 1e-05
    %v2275 = vadd.f32 %v2270, 1e-05
    %v2276 = vadd.f32 %v2271, 1e-05
    %v2277 = vadd.f32 %v2272, 1e-05
    %v2278 = vrsqrt.pop %v2273
    %v2279 = vrsqrt.pop %v2274
    %v2280 = vrsqrt.pop %v2275
    %v2281 = vrsqrt.pop %v2276
    %v2282 = vrsqrt.pop %v2277
    %v2288 = vcombine.low %v2278, %v2279
    %v2289 = vcombine.low %v2280, %v2281
    %v2291 = vunpack.c.l.s4 1966171168
    %v2292 = vunpack.c.0.s8 %v2291
    %v2293 = vlaneseq
    %v2294 = vshrl.u32 %v2293, 7
    %v2295 = vsub.s32 %v2292, %v2294
    %v2296 = vrot.slane %v2288, %v2295
    %v2298 = vunpack.c.l.s4 1966171168
    %v2299 = vunpack.c.0.s8 %v2298
    %v2300 = vlaneseq
    %v2301 = vshrl.u32 %v2300, 7
    %v2302 = vsub.s32 %v2299, %v2301
    %v2303 = vrot.slane %v2289, %v2302
    %v2305 = vunpack.c.l.s4 1966171168
    %v2306 = vunpack.c.0.s8 %v2305
    %v2307 = vlaneseq
    %v2308 = vshrl.u32 %v2307, 7
    %v2309 = vsub.s32 %v2306, %v2308
    %v2310 = vrot.slane %v2282, %v2309
    %v2311 = vcombine.low %v2296, %v2303
    %v2313 = vunpack.c.l.s4 1966171168
    %v2314 = vunpack.c.0.s8 %v2313
    %v2315 = vlaneseq
    %v2316 = vshrl.u32 %v2315, 7
    %v2317 = vsub.s32 %v2314, %v2316
    %v2318 = vrot.slane %v2311, %v2317
    %v2320 = vunpack.c.l.s4 1966171168
    %v2321 = vunpack.c.0.s8 %v2320
    %v2322 = vlaneseq
    %v2323 = vshrl.u32 %v2322, 7
    %v2324 = vsub.s32 %v2321, %v2323
    %v2325 = vrot.slane %v2310, %v2324
    %v2326 = vcombine.low %v2318, %v2325
    %v2328 = vmul.f32 %v1973, %v2326
    %v2330 = vlaneseq
    %v2331 = vshrl.u32 %v2330, 7
    %v2332 = vsub.s32 0, %v2331
    %v2333 = vrot.slane %v2328, %v2332
    %v2334 = vlaneseq
    %v2335 = vshrl.u32 %v2334, 7
    %v2336 = vsub.s32 1, %v2335
    %v2337 = vrot.slane %v2328, %v2336
    %v2338 = vlaneseq
    %v2339 = vshrl.u32 %v2338, 7
    %v2340 = vsub.s32 2, %v2339
    %v2341 = vrot.slane %v2328, %v2340
    %v2342 = vlaneseq
    %v2343 = vshrl.u32 %v2342, 7
    %v2344 = vsub.s32 3, %v2343
    %v2345 = vrot.slane %v2328, %v2344
    %v2346 = vlaneseq
    %v2347 = vshrl.u32 %v2346, 7
    %v2348 = vsub.s32 4, %v2347
    %v2349 = vrot.slane %v2328, %v2348
    %v2355 = vmul.f32 %v2223, %v2333
    %v2356 = vmul.f32 %v2224, %v2337
    %v2357 = vmul.f32 %v2225, %v2341
    %v2358 = vmul.f32 %v2226, %v2345
    %v2359 = vmul.f32 %v2227, %v2349
    %v2360 = vadd.f32 %v2355, %v2156
    %v2361 = vadd.f32 %v2356, %v2160
    %v2362 = vadd.f32 %v2357, %v2164
    %v2363 = vadd.f32 %v2358, %v2168
    %v2364 = vadd.f32 %v2359, %v2172
    %v2365 = vadd.f32 %v2178, %v2360
    %v2366 = vadd.f32 %v2179, %v2361
    %v2367 = vsub.f32 0.0, %v2365
    %v2368 = vsub.f32 0.0, %v2366
    %v2369 = vmul.f32 %v2367, 1.442695
    %v2370 = vpow.pop %v2369
    %v2371 = vmul.f32 %v2368, 1.442695
    %v2372 = vpow.pop %v2371
    %v2373 = vadd.f32 %v2370, 1.0
    %v2374 = vadd.f32 %v2372, 1.0
    %v2375 = vrcp.pop %v2373
    %v2376 = vmul.f32 1.0, %v2375
    %v2377 = vrcp.pop %v2374
    %v2378 = vmul.f32 1.0, %v2377
    %v2379 = vadd.f32 %v2180, %v2362
    %v2380 = vadd.f32 %v2181, %v2363
    %v2381 = vsub.f32 0.0, %v2379
    %v2382 = vsub.f32 0.0, %v2380
    %v2383 = vmul.f32 %v2381, 1.442695
    %v2384 = vpow.pop %v2383
    %v2385 = vmul.f32 %v2382, 1.442695
    %v2386 = vpow.pop %v2385
    %v2387 = vadd.f32 %v2384, 1.0
    %v2388 = vadd.f32 %v2386, 1.0
    %v2389 = vrcp.pop %v2387
    %v2390 = vmul.f32 1.0, %v2389
    %v2391 = vrcp.pop %v2388
    %v2392 = vmul.f32 1.0, %v2391
    %2395 = vrot.lane.b32.xlu0 %v2363, 56
    %v2396 = vpop.permute.xlu0 %2395
    %2397 = vrot.lane.b32.xlu0 %v2364, 56
    %v2398 = vpop.permute.xlu0 %2397
    %v2399 = vsel %vm1186, %v2396, %v2398
    %v2403 = vmul.f32 %v2378, %v2396
    %v2404 = vmul.f32 %v2390, %v2399
    %v2405 = vmul.f32 %v2392, %v2398
    %2409 = vrot.lane.b32.xlu0 %v2403, 72
    %v2410 = vpop.permute.xlu0 %2409
    %2411 = vrot.lane.b32.xlu0 %v2404, 72
    %v2412 = vpop.permute.xlu0 %2411
    %2413 = vrot.lane.b32.xlu0 %v2405, 72
    %v2414 = vpop.permute.xlu0 %2413
    %v2415 = vsel %vm543, %v2410, %v2412
    %v2416 = vsel %vm543, %v2412, %v2414
    %v2419 = vadd.f32 %v2181, %v2415
    %v2420 = vadd.f32 %v2182, %v2416
    %v2421 = vtanh.pop %v2419
    %v2422 = vtanh.pop %v2420
    %v2423 = vsub.f32 1.0, %v2376
    %v2424 = vsub.f32 1.0, %v2378
    %v2426 = vmul.f32 %v2423, %v1238
    %v2427 = vmul.f32 %v2424, %v1758
    %2430 = vrot.lane.b32.xlu0 %v2421, 112
    %v2431 = vpop.permute.xlu0 %2430
    %2432 = vrot.lane.b32.xlu0 %v2422, 112
    %v2433 = vpop.permute.xlu0 %2432
    %v2434 = vsel %vm1222, %v2431, %v2433
    %v2437 = vmul.f32 %v2376, %v2434
    %v2438 = vmul.f32 %v2378, %v2433
    %v2439 = vadd.f32 %v2426, %v2437
    %v2440 = vadd.f32 %v2427, %v2438
    %v2443 = vcombine.low %v2439, %v2440
    %s2445 = scalar_lea.vmem %s14, 8
    %2446 = vst.msk [vmem:[%s2445] sm:$0x77] %vm1235, %v2443
    // Predicated region
    $region78: #{tpu_custom_call.1} parent=1 // pred_check
      _
    $region79: #{tpu_custom_call.1} parent=1 // pred_check_branch
      %2448 = sbr.rel (0) target = $region81
    $region80: #{tpu_custom_call.1} parent=1 // pred_region
      _
    $region81: #{tpu_custom_call.1} parent=1 // pred_fallthru
      _
    // Predicated region
    $region82: #{tpu_custom_call.1} parent=1 // pred_check
      _
    $region83: #{tpu_custom_call.1} parent=1 // pred_check_branch
      %2450 = sbr.rel (0) target = $region85
    $region84: #{tpu_custom_call.1} parent=1 // pred_region
      _
    $region85: #{tpu_custom_call.1} parent=1 // pred_fallthru
      _
    %2451 = vsyncpa [#allocation3], 1
    %2452 = vsyncpa [#allocation5], 1
    %2453 = vsyncpa [#allocation8], 1

</llo_original>
